<compile_context>
chip_gen: v5e
topology: v5e:2x2
jax: 0.10.0
libtpu: 0.0.40
codegen_flags: <defaults>
</compile_context>

<pallas_src>
import functools

import jax
import jax.numpy as jnp
from jax import lax
from jax.experimental import pallas as pl
from jax.experimental.pallas import tpu as pltpu


def _attention_body(qkv, cr, out_dtype):
    """qkv: (2*cr + Cout, N) f32 -> (Cout, N) attention output."""
    q = qkv[:cr, :]            # (Cr,   N)
    k = qkv[cr:2 * cr, :]      # (Cr,   N)
    v = qkv[2 * cr:, :]        # (Cout, N)

    # logits[n1, n2] = sum_c q[c, n1] * k[c, n2] -- contract on the LEADING axis of
    # both operands (MXU-native), no q.T materialization.
    attn = lax.dot_general(q, k, (((0,), (0,)), ((), ())),
                           preferred_element_type=jnp.float32)       # (N, N)

    # Numerically-stable exp; normalization is deferred past the output matmul.
    attn = jnp.exp(attn - jnp.max(attn, axis=-1, keepdims=True))
    denom = jnp.sum(attn, axis=-1, keepdims=True)                    # (N, 1)

    # out_un[c, n1] = sum_n2 v[c, n2] * attn[n1, n2]: rhs-transposed dot_general.
    out_un = lax.dot_general(v, attn, (((1,), (1,)), ((), ())),
                             preferred_element_type=jnp.float32)     # (Cout, N)

    # Approx (EUP) reciprocal + one Newton-Raphson step (~f32-accurate, well inside
    # the 1e-4 tolerance), applied to the (Cout, N) output instead of the (N, N) map.
    r = pl.reciprocal(denom, approx=True)
    r = r * (2.0 - denom * r)                                        # (N, 1)
    return (out_un * r.reshape(1, -1)).astype(out_dtype)             # scale lanes


def _attention_kernel_grid(x_ref, w_ref, out_ref, *, cr):
    # One grid step == one batch element ("parallel" axis -> sharded across the two
    # TensorCores on v7x).
    # x_ref[0]: (Cin+1, N) with a trailing constant-1 row; w_ref: (C_all, Cin+1)
    # carrying the folded bias column -> single fused projection, no bias add.
    qkv = jnp.dot(w_ref[...], x_ref[0], preferred_element_type=jnp.float32)
    out_ref[0] = _attention_body(qkv, cr, out_ref.dtype)


def _attention_kernel_collapsed(x_ref, w_ref, out_ref, *, cr, n, batch):
    # Single grid step for single-TensorCore chips: one projection over all batches
    # (doubles the lane extent of the badly underfilled K=Cin+1 contraction), then the
    # per-batch attention blocks unrolled (batch is small & static).
    qkv_all = jnp.dot(w_ref[...], x_ref[...],
                      preferred_element_type=jnp.float32)            # (C_all, B*N)
    for b in range(batch):
        out_ref[b] = _attention_body(qkv_all[:, b * n:(b + 1) * n], cr, out_ref.dtype)


def _single_tensorcore_chip():
    """True for TPU generations with one TensorCore per chip (v2..v6)."""
    try:
        kind = jax.devices()[0].device_kind.lower()
    except Exception:
        return False
    return any(tag in kind for tag in ("v2", "v3", "v4", "v5", "v6"))


def _pad_rows(m, target):
    return jnp.pad(m, ((0, target - m.shape[0]), (0, 0)))


def attention_module_pallas(x_nchw, params):
    """x_nchw: (B, Cin, H, W) float32 -> (B, Cout, H, W) float32."""
    B, Cin, H, W = x_nchw.shape
    N = H * W
    ew, eb, sw, sb, qw, qb, kw, kb, vw, vb = params
    Cout = ew.shape[1]
    Cr = sw.shape[1]

    # ---- Fold the affine pre-attention chain (exact algebra, trivial XLA work) ----
    # channels-last convention here: w (Cin_k, Cout_k), b (1, Cout_k)
    ws = ew @ sw                      # (Cin, Cr)
    bs = eb @ sw + sb                 # (1, Cr)
    wq, bq = ws @ qw, bs @ qw + qb    # (Cin, Cr), (1, Cr)
    wk, bk = ws @ kw, bs @ kw + kb
    wv, bv = ws @ vw, bs @ vw + vb    # (Cin, Cout), (1, Cout)

    # Pad Cr up to a multiple of 8 so the q/k/v slices of the projection output are
    # (8,128)-tile aligned (zero rows contribute 0 to the logits). No-op at Cr=8.
    Crp = ((Cr + 7) // 8) * 8
    wq_r = _pad_rows(wq.T, Crp)       # (Crp, Cin)
    bq_r = _pad_rows(bq.T, Crp)       # (Crp, 1)
    wk_r = _pad_rows(wk.T, Crp)
    bk_r = _pad_rows(bk.T, Crp)

    # Channels-first projection with the bias folded in as an extra input channel:
    #   qkv = W_aug @ [x ; 1]   with W_aug = [W_all | b_all]  (C_all, Cin+1)
    w_all = jnp.concatenate([wq_r, wk_r, wv.T], axis=0)              # (C_all, Cin)
    b_all = jnp.concatenate([bq_r, bk_r, bv.T], axis=0)              # (C_all, 1)
    w_aug = jnp.concatenate([w_all, b_all], axis=1)                  # (C_all, Cin+1)
    C_all = 2 * Crp + Cout
    Cp = Cin + 1

    # NCHW is already channels-first -> pure reshape; append the constant-1 row.
    x_bcn = x_nchw.reshape(B, Cin, N)
    x_aug = jnp.concatenate(
        [x_bcn, jnp.ones((B, 1, N), x_bcn.dtype)], axis=1)           # (B, Cp, N)

    collapse = _single_tensorcore_chip() and B > 1 and B <= 8

    if collapse:
        # Single grid step: projection over (Cp, B*N), per-batch attention in-kernel.
        x_cbn = jnp.transpose(x_aug, (1, 0, 2)).reshape(Cp, B * N)
        kernel = functools.partial(_attention_kernel_collapsed, cr=Crp, n=N, batch=B)
        out_bcn = pl.pallas_call(
            kernel,
            out_shape=jax.ShapeDtypeStruct((B, Cout, N), jnp.float32),
            grid_spec=pltpu.PrefetchScalarGridSpec(
                num_scalar_prefetch=0,
                grid=(1,),
                in_specs=[
                    pl.BlockSpec((Cp, B * N), lambda i: (0, 0)),
                    pl.BlockSpec((C_all, Cp), lambda i: (0, 0)),
                ],
                out_specs=pl.BlockSpec((B, Cout, N), lambda i: (0, 0, 0)),
            ),
            compiler_params=pltpu.CompilerParams(
                dimension_semantics=("arbitrary",)),
        )(x_cbn, w_aug)
    else:
        # Batch on a "parallel" grid axis (shards across v7x's two TensorCores).
        kernel = functools.partial(_attention_kernel_grid, cr=Crp)
        out_bcn = pl.pallas_call(
            kernel,
            out_shape=jax.ShapeDtypeStruct((B, Cout, N), jnp.float32),
            grid_spec=pltpu.PrefetchScalarGridSpec(
                num_scalar_prefetch=0,
                grid=(B,),
                in_specs=[
                    pl.BlockSpec((1, Cp, N), lambda b: (b, 0, 0)),
                    pl.BlockSpec((C_all, Cp), lambda b: (0, 0)),
                ],
                out_specs=pl.BlockSpec((1, Cout, N), lambda b: (b, 0, 0)),
            ),
            compiler_params=pltpu.CompilerParams(
                dimension_semantics=("parallel",)),
        )(x_aug, w_aug)

    # (B, Cout, N) -> (B, Cout, H, W): pure reshape (PyTorch output layout).
    return out_bcn.reshape(B, Cout, H, W)


def make_params(key, in_channels, out_channels, reduction_ratio):
    """Deterministic synthetic parameters. Weights stored as (Cin, Cout); biases as (1, Cout)."""
    cr = out_channels // reduction_ratio
    shapes = [
        (in_channels, out_channels),   # expand_conv
        (out_channels, cr),            # squeeze_conv
        (cr, cr),                      # query_conv
        (cr, cr),                      # key_conv
        (cr, out_channels),            # value_conv
    ]
    params = []
    for shp in shapes:
        key, kw_, kb_ = jax.random.split(key, 3)
        fan_in = shp[0]
        scale = 1.0 / jnp.sqrt(jnp.float32(fan_in))
        w = jax.random.uniform(kw_, shp, jnp.float32, -scale, scale)
        b = jax.random.uniform(kb_, (1, shp[1]), jnp.float32, -scale, scale)
        params += [w, b]
    return tuple(params)


def reference_jax(x_nchw, params):
    """Pure-JAX reference of the PyTorch forward (unfolded chain; K as reshaped, see NOTE)."""
    B, Cin, H, W = x_nchw.shape
    N = H * W
    ew, eb, sw, sb, qw, qb, kw, kb, vw, vb = params
    x = jnp.transpose(x_nchw, (0, 2, 3, 1)).reshape(B, N, Cin)
    xe = x @ ew + eb
    xs = xe @ sw + sb
    q = xs @ qw + qb
    k = xs @ kw + kb
    v = xs @ vw + vb
    attn = jnp.einsum("bnc,bmc->bnm", q, k)
    attn = jax.nn.softmax(attn, axis=-1)
    out = jnp.einsum("bnm,bmc->bnc", attn, v)
    Cout = ew.shape[1]
    return jnp.transpose(out.reshape(B, H, W, Cout), (0, 3, 1, 2))


if __name__ == "__main__":
    in_channels, out_channels, reduction_ratio = 4, 128, 16
    B, H, W = 2, 16, 16

    key = jax.random.PRNGKey(0)
    key, kx = jax.random.split(key)
    x = jax.random.normal(kx, (B, in_channels, H, W), jnp.float32)
    params = make_params(key, in_channels, out_channels, reduction_ratio)

    run = jax.jit(attention_module_pallas)
    out = jax.block_until_ready(run(x, params))

    ref = reference_jax(x, params)
    assert out.shape == (B, out_channels, H, W), out.shape
    assert jnp.allclose(out, ref, atol=1e-4, rtol=1e-4), float(jnp.max(jnp.abs(out - ref)))

    print("KERNEL_OK")
</pallas_src>

<mosaic_0001>
module attributes {stable_mosaic.version = 11 : i64} {
  func.func @_attention_kernel_grid(%arg0: i32, %arg1: memref<1x5x256xf32, #tpu.memory_space<vmem>>, %arg2: memref<144x5xf32, #tpu.memory_space<vmem>>, %arg3: memref<1x128x256xf32, #tpu.memory_space<vmem>>) attributes {dimension_semantics = [#tpu.dimension_semantics<parallel>], iteration_bounds = array<i64: 2>, scalar_prefetch = 0 : i64, scratch_operands = 0 : i64, tpu.core_type = #tpu.core_type<tc>, window_params = [{transform_indices = @transform_0, window_bounds = array<i64: 1, 5, 256>}, {pipeline_mode = #tpu.pipeline_mode<synchronous>, transform_indices = @transform_1, window_bounds = array<i64: 144, 5>}, {transform_indices = @transform_2, window_bounds = array<i64: 1, 128, 256>}]} {
    %c0 = arith.constant 0 : index
    %c0_0 = arith.constant 0 : index
    %0 = vector.load %arg2[%c0, %c0_0] : memref<144x5xf32, #tpu.memory_space<vmem>>, vector<144x5xf32>
    %c0_1 = arith.constant 0 : index
    %c0_2 = arith.constant 0 : index
    %c0_3 = arith.constant 0 : index
    %1 = vector.load %arg1[%c0_1, %c0_2, %c0_3] : memref<1x5x256xf32, #tpu.memory_space<vmem>>, vector<1x5x256xf32>
    %2 = vector.shape_cast %1 : vector<1x5x256xf32> to vector<5x256xf32>
    %cst = arith.constant dense<0.000000e+00> : vector<144x256xf32>
    %3 = tpu.matmul %0, %2, %cst {dimension_numbers = #tpu.dot_dimension_numbers<[1], [0], [0], [1], [0, 0, 1, 1], [], []>} : vector<144x5xf32>, vector<5x256xf32>, vector<144x256xf32> -> vector<144x256xf32>
    %4 = vector.extract_strided_slice %3 {offsets = [0, 0], sizes = [8, 256], strides = [1, 1]} : vector<144x256xf32> to vector<8x256xf32>
    %5 = vector.extract_strided_slice %3 {offsets = [8, 0], sizes = [8, 256], strides = [1, 1]} : vector<144x256xf32> to vector<8x256xf32>
    %6 = vector.extract_strided_slice %3 {offsets = [16, 0], sizes = [128, 256], strides = [1, 1]} : vector<144x256xf32> to vector<128x256xf32>
    %cst_4 = arith.constant dense<0.000000e+00> : vector<256x256xf32>
    %7 = tpu.matmul %4, %5, %cst_4 {dimension_numbers = #tpu.dot_dimension_numbers<[0], [0], [1], [1], [0, 1, 1, 1], [], []>} : vector<8x256xf32>, vector<8x256xf32>, vector<256x256xf32> -> vector<256x256xf32>
    %cst_5 = arith.constant dense<0xFF800000> : vector<256xf32>
    %8 = vector.multi_reduction <maximumf>, %7, %cst_5 [1] : vector<256x256xf32> to vector<256xf32>
    %9 = vector.shape_cast %8 : vector<256xf32> to vector<256x1xf32>
    %10 = vector.broadcast %9 : vector<256x1xf32> to vector<256x256xf32>
    %11 = arith.subf %7, %10 : vector<256x256xf32>
    %12 = math.exp %11 : vector<256x256xf32>
    %cst_6 = arith.constant dense<0.000000e+00> : vector<256xf32>
    %13 = vector.multi_reduction <add>, %12, %cst_6 [1] : vector<256x256xf32> to vector<256xf32>
    %14 = vector.shape_cast %13 : vector<256xf32> to vector<256x1xf32>
    %cst_7 = arith.constant dense<0.000000e+00> : vector<128x256xf32>
    %15 = tpu.matmul %6, %12, %cst_7 {dimension_numbers = #tpu.dot_dimension_numbers<[1], [1], [0], [0], [0, 0, 1, 0], [], []>} : vector<128x256xf32>, vector<256x256xf32>, vector<128x256xf32> -> vector<128x256xf32>
    %16 = tpu.reciprocal %14 {approx = true} : vector<256x1xf32> -> vector<256x1xf32>
    %17 = arith.mulf %14, %16 : vector<256x1xf32>
    %cst_8 = arith.constant 2.000000e+00 : f32
    %18 = vector.broadcast %cst_8 : f32 to vector<256x1xf32>
    %19 = arith.subf %18, %17 : vector<256x1xf32>
    %20 = arith.mulf %16, %19 : vector<256x1xf32>
    %21 = vector.shape_cast %20 : vector<256x1xf32> to vector<1x256xf32>
    %22 = vector.broadcast %21 : vector<1x256xf32> to vector<128x256xf32>
    %23 = arith.mulf %15, %22 : vector<128x256xf32>
    %c0_9 = arith.constant 0 : index
    %c0_10 = arith.constant 0 : index
    %c0_11 = arith.constant 0 : index
    %24 = vector.load %arg3[%c0_9, %c0_10, %c0_11] : memref<1x128x256xf32, #tpu.memory_space<vmem>>, vector<1x128x256xf32>
    %25 = vector.shape_cast %24 : vector<1x128x256xf32> to vector<128x256xf32>
    %26 = vector.shape_cast %23 : vector<128x256xf32> to vector<1x128x256xf32>
    tpu.vector_store %arg3[%c0_9, %c0_10, %c0_11], %26 {strides = array<i32>} : memref<1x128x256xf32, #tpu.memory_space<vmem>>, vector<1x128x256xf32>,
    return
  }
  func.func @transform_0(%arg0: i32) -> (i32, i32, i32) {
    %c0_i32 = arith.constant 0 : i32
    %c0_i32_0 = arith.constant 0 : i32
    %c0_i32_1 = arith.constant 0 : i32
    return %arg0, %c0_i32, %c0_i32_0 : i32, i32, i32
  }
  func.func @transform_1(%arg0: i32) -> (i32, i32) {
    %c0_i32 = arith.constant 0 : i32
    %c0_i32_0 = arith.constant 0 : i32
    %c0_i32_1 = arith.constant 0 : i32
    return %c0_i32, %c0_i32_0 : i32, i32
  }
  func.func @transform_2(%arg0: i32) -> (i32, i32, i32) {
    %c0_i32 = arith.constant 0 : i32
    %c0_i32_0 = arith.constant 0 : i32
    %c0_i32_1 = arith.constant 0 : i32
    return %arg0, %c0_i32, %c0_i32_0 : i32, i32, i32
  }
}

</mosaic_0001>

<llo_original>
// kernel: attention_module_pallas.1
$region0: #{attention_module_pallas.1}
  #allocation0 [shape = 'u32[]', space=smem, size = 0x4, offset = 0x4, fixed_abs, tag = 'smem constant byte address 0x4 - core index']
  #allocation1 [shape = 'u32[72,128]{1,0:T(1,128)}', space=vmem, size = 0x9000, scoped, tag = 'internal scratch']
  %s0 = inlined_call_operand.vmem [shape: f32[2,5,256], index: 0, kind: input, shape index: {}]
  %s1 = inlined_call_operand.vmem [shape: f32[144,5], index: 1, kind: input, shape index: {}]
  %s2 = inlined_call_operand.vmem [shape: f32[2,128,256], index: 2, kind: output, shape index: {}]
  %s3 = sld [smem:[#allocation0]]
  $region41: #{attention_module_pallas.1} parent=0
    _
  %s5 = ssub.s32 1, %s3
  %s6 = scalar_select 0, %s5, %s3
  loop: start=0, step=1, limit=4
  $region2: #{attention_module_pallas.1} parent=0 // loop_pre_header
    _
  $region3: #{attention_module_pallas.1} parent=0 // loop_header
    %s8 = sphi 0, %s12
    %p9 = scmp.ge.s32.totalorder %s8, 4
    %s18 = sphi 0, %s20
    %s21 = sphi 0, %s18
    %s22 = sphi 0, %s21
    %s38 = sphi 0, %s22
    %s42 = sphi 0, %s42
    %s44 = sphi 0, %s42
    %s45 = sphi 0, %s44
    %s59 = sphi 0, %s45
    %s65 = sphi 0, %s67
    %s68 = sphi 0, %s65
    %s69 = sphi 0, %s68
    %s85 = sphi 0, %s69
  $region4: #{attention_module_pallas.1} parent=0 // loop_header_branch
    %11 = sbr.rel (%p9) target = $region8
  $region5: #{attention_module_pallas.1} parent=0 // loop_body
    %s13 = ssub.s32 %s8, 1
    %s14 = ssub.s32 %s8, 2
    %s15 = sadd.s32 %s8, 1
    %s16 = ssub.s32 %s8, %s15
    %p17 = scmp.eq.s32.totalorder %s16, 0
    %s19 = sadd.s32 %s18, 1
    %s20 = scalar_select %p17, %s18, %s19
    %p23 = pneg %p17
    %p24 = scmp.eq.s32.totalorder %s8, 1
    %p25 = por %p23, %p24
    %p26 = scmp.ne.s32.totalorder %s18, %s21
    %p27 = scmp.eq.s32.totalorder %s8, 0
    %p28 = por %p26, %p27
    %p29 = scmp.ne.s32.totalorder %s18, %s21
    %p30 = scmp.eq.s32.totalorder %s13, 1
    %p31 = por %p29, %p30
    %p32 = scmp.ne.s32.totalorder %s21, %s22
    %p33 = scmp.eq.s32.totalorder %s13, 0
    %p34 = por %p32, %p33
    %p35 = scmp.ne.s32.totalorder %s21, %s22
    %p36 = scmp.eq.s32.totalorder %s14, 1
    %p37 = por %p35, %p36
    %p39 = scmp.ne.s32.totalorder %s22, %s38
    %p40 = scmp.eq.s32.totalorder %s14, 0
    %p41 = por %p39, %p40
    %s43 = sadd.s32 %s42, 1
    %p46 = scmp.eq.s32.totalorder %s8, 1
    %p47 = scmp.ne.s32.totalorder %s42, %s44
    %p48 = scmp.eq.s32.totalorder %s8, 0
    %p49 = por %p47, %p48
    %p50 = scmp.ne.s32.totalorder %s42, %s44
    %p51 = scmp.eq.s32.totalorder %s13, 1
    %p52 = por %p50, %p51
    %p53 = scmp.ne.s32.totalorder %s44, %s45
    %p54 = scmp.eq.s32.totalorder %s13, 0
    %p55 = por %p53, %p54
    %p56 = scmp.ne.s32.totalorder %s44, %s45
    %p57 = scmp.eq.s32.totalorder %s14, 1
    %p58 = por %p56, %p57
    %p60 = scmp.ne.s32.totalorder %s45, %s59
    %p61 = scmp.eq.s32.totalorder %s14, 0
    %p62 = por %p60, %p61
    %s63 = ssub.s32 %s8, %s15
    %p64 = scmp.eq.s32.totalorder %s63, 0
    %s66 = sadd.s32 %s65, 1
    %s67 = scalar_select %p64, %s65, %s66
    %p70 = pneg %p64
    %p71 = scmp.eq.s32.totalorder %s8, 1
    %p72 = por %p70, %p71
    %p73 = scmp.ne.s32.totalorder %s65, %s68
    %p74 = scmp.eq.s32.totalorder %s8, 0
    %p75 = por %p73, %p74
    %p76 = scmp.ne.s32.totalorder %s65, %s68
    %p77 = scmp.eq.s32.totalorder %s13, 1
    %p78 = por %p76, %p77
    %p79 = scmp.ne.s32.totalorder %s68, %s69
    %p80 = scmp.eq.s32.totalorder %s13, 0
    %p81 = por %p79, %p80
    %p82 = scmp.ne.s32.totalorder %s68, %s69
    %p83 = scmp.eq.s32.totalorder %s14, 1
    %p84 = por %p82, %p83
    %p86 = scmp.ne.s32.totalorder %s69, %s85
    %p87 = scmp.eq.s32.totalorder %s14, 0
    %p88 = por %p86, %p87
    %p89 = scmp.le.s32.totalorder 1, %s8
    %p90 = scmp.lt.s32.totalorder %s8, 3
    %p91 = pnand %p89, %p90
    %p92 = pneg %p91
    // Predicated region
    $region9: #{attention_module_pallas.1} parent=5 // pred_check
      _
    $region10: #{attention_module_pallas.1} parent=5 // pred_check_branch
      %94 = sbr.rel (%p91) target = $region12
    $region11: #{attention_module_pallas.1} parent=5 // pred_region
      %s95 = ssub.s32 %s8, 1
      // Predicated region
      $region13: #{attention_module_pallas.1} parent=11 // pred_check
        %p96 = pneg %p55
      $region14: #{attention_module_pallas.1} parent=11 // pred_check_branch
        %98 = sbr.rel (%p96) target = $region16
      $region15: #{attention_module_pallas.1} parent=11 // pred_region
        _
      $region16: #{attention_module_pallas.1} parent=11 // pred_fallthru
        _
    $region12: #{attention_module_pallas.1} parent=5 // pred_fallthru
      _
    %p99 = scmp.lt.s32.totalorder %s8, 2
    // Predicated region
    $region17: #{attention_module_pallas.1} parent=5 // pred_check
      %p100 = pneg %p99
    $region18: #{attention_module_pallas.1} parent=5 // pred_check_branch
      %102 = sbr.rel (%p100) target = $region20
    $region19: #{attention_module_pallas.1} parent=5 // pred_region
      // Predicated region
      $region21: #{attention_module_pallas.1} parent=19 // pred_check
        %p103 = pneg %p28
      $region22: #{attention_module_pallas.1} parent=19 // pred_check_branch
        %105 = sbr.rel (%p103) target = $region24
      $region23: #{attention_module_pallas.1} parent=19 // pred_region
        %p106 = scmp.lt.s32.totalorder %s8, 1
        %s107 = scalar_select %p106, %s8, 1
        %s108 = smul.addr %s107, 2
        %s109 = smul.addr %s108, 8
        %s110 = scalar_lea.vmem %s0, %s109
      $region24: #{attention_module_pallas.1} parent=19 // pred_fallthru
        _
    $region20: #{attention_module_pallas.1} parent=5 // pred_fallthru
      _
    %p111 = scmp.le.s32.totalorder 1, %s8
    %p112 = scmp.lt.s32.totalorder %s8, 3
    %p113 = pnand %p111, %p112
    %p114 = pneg %p113
    // Predicated region
    $region25: #{attention_module_pallas.1} parent=5 // pred_check
      _
    $region26: #{attention_module_pallas.1} parent=5 // pred_check_branch
      %116 = sbr.rel (%p113) target = $region28
    $region27: #{attention_module_pallas.1} parent=5 // pred_region
      %s117 = ssub.s32 %s8, 1
      %p118 = scmp.lt.s32.totalorder %s13, 1
      %s119 = scalar_select %p118, %s13, 1
      %s120 = smul.addr %s119, 2
      %s121 = smul.addr %s120, 8
      %s122 = scalar_lea.vmem %s0, %s121
      %p123 = pneg %p34
      %p124 = pneg %p31
      %p125 = pneg %p55
      %p126 = pneg %p52
      %p127 = pneg %p81
      %p128 = pneg %p78
      %p129 = scmp.lt.s32.totalorder %s13, 1
      %s130 = scalar_select %p129, %s13, 1
      %s131 = smul.addr %s130, 32
      %s132 = smul.addr %s131, 8
      %s133 = scalar_lea.vmem %s2, %s132
      %p134 = scmp.lt.s32.totalorder %s13, 1
      %s135 = scalar_select %p134, %s13, 1
      %s136 = smul.addr %s135, 2
      %s137 = smul.addr %s136, 8
      %s138 = scalar_lea.vmem %s0, %s137
      %p139 = scmp.lt.s32.totalorder %s13, 1
      %s140 = scalar_select %p139, %s13, 1
      %s141 = smul.addr %s140, 32
      %s142 = smul.addr %s141, 8
      %s143 = scalar_lea.vmem %s2, %s142
      %v144 = vld [vmem:[%s1] sm:$0xff]
      %v145 = vld [vmem:[%s1 + $0x8] sm:$0xff]
      %v146 = vld [vmem:[%s1 + $0x10] sm:$0xff]
      %v147 = vld [vmem:[%s1 + $0x18] sm:$0xff]
      %v148 = vld [vmem:[%s1 + $0x20] sm:$0xff]
      %v149 = vld [vmem:[%s1 + $0x28] sm:$0xff]
      %v150 = vld [vmem:[%s1 + $0x30] sm:$0xff]
      %v151 = vld [vmem:[%s1 + $0x38] sm:$0xff]
      %v152 = vld [vmem:[%s1 + $0x40] sm:$0xff]
      %v153 = vld [vmem:[%s1 + $0x48] sm:$0xff]
      %v154 = vld [vmem:[%s1 + $0x50] sm:$0xff]
      %v155 = vld [vmem:[%s1 + $0x58] sm:$0xff]
      %v156 = vld [vmem:[%s1 + $0x60] sm:$0xff]
      %v157 = vld [vmem:[%s1 + $0x68] sm:$0xff]
      %v158 = vld [vmem:[%s1 + $0x70] sm:$0xff]
      %v159 = vld [vmem:[%s1 + $0x78] sm:$0xff]
      %v160 = vld [vmem:[%s1 + $0x80] sm:$0xff]
      %v161 = vld [vmem:[%s1 + $0x88] sm:$0xff]
      %v162 = vld [vmem:[%s138] sm:$0x1f]
      %v163 = vld [vmem:[%s138 + $0x8] sm:$0x1f]
      %vm164 = vcmask 39936
      %v166 = vsel %vm164, %v144, 0
      %v169 = vsel %vm164, %v145, 0
      %v172 = vsel %vm164, %v146, 0
      %v175 = vsel %vm164, %v147, 0
      %v178 = vsel %vm164, %v148, 0
      %v181 = vsel %vm164, %v149, 0
      %v184 = vsel %vm164, %v150, 0
      %v187 = vsel %vm164, %v151, 0
      %v190 = vsel %vm164, %v152, 0
      %v193 = vsel %vm164, %v153, 0
      %v196 = vsel %vm164, %v154, 0
      %v199 = vsel %vm164, %v155, 0
      %v202 = vsel %vm164, %v156, 0
      %v205 = vsel %vm164, %v157, 0
      %v208 = vsel %vm164, %v158, 0
      %v211 = vsel %vm164, %v159, 0
      %v214 = vsel %vm164, %v160, 0
      %v217 = vsel %vm164, %v161, 0
      %vm219 = vcmask 1044480
      %v221 = vsel %vm219, %v162, 0
      %v224 = vsel %vm219, %v163, 0
      %226 = vmatpush.msra.mxu0 0.0
      %227 = vmatpush.msra.mxu0 0.0
      %228 = vmatpush.msra.mxu0 0.0
      %229 = vmatpush.msra.mxu0 0.0
      %230 = vmatpush.msra.mxu0 0.0
      %231 = vmatpush.msra.mxu0 0.0
      %232 = vmatpush.msra.mxu0 0.0
      %233 = vmatpush.msra.mxu0 0.0
      %234 = vmatpush.msra.mxu0 0.0
      %235 = vmatpush.msra.mxu0 0.0
      %236 = vmatpush.msra.mxu0 0.0
      %237 = vmatpush.msra.mxu0 0.0
      %238 = vmatpush.msra.mxu0 0.0
      %239 = vmatpush.msra.mxu0 0.0
      %240 = vmatpush.msra.mxu0 0.0
      %241 = vmatpush.msra.mxu0 %v221
      %242 = vmatmul.f32.gmra.mxu0 %v166
      %v243 = vpop.f32.mrf.mxu0
      %v244 = vadd.f32 0.0, %v243
      %245 = vmatmul.f32.gmra.mxu0 %v169
      %v246 = vpop.f32.mrf.mxu0
      %v247 = vadd.f32 0.0, %v246
      %248 = vmatmul.f32.gmra.mxu0 %v172
      %v249 = vpop.f32.mrf.mxu0
      %v250 = vadd.f32 0.0, %v249
      %251 = vmatmul.f32.gmra.mxu0 %v175
      %v252 = vpop.f32.mrf.mxu0
      %v253 = vadd.f32 0.0, %v252
      %254 = vmatmul.f32.gmra.mxu0 %v178
      %v255 = vpop.f32.mrf.mxu0
      %v256 = vadd.f32 0.0, %v255
      %257 = vmatmul.f32.gmra.mxu0 %v181
      %v258 = vpop.f32.mrf.mxu0
      %v259 = vadd.f32 0.0, %v258
      %260 = vmatmul.f32.gmra.mxu0 %v184
      %v261 = vpop.f32.mrf.mxu0
      %v262 = vadd.f32 0.0, %v261
      %263 = vmatmul.f32.gmra.mxu0 %v187
      %v264 = vpop.f32.mrf.mxu0
      %v265 = vadd.f32 0.0, %v264
      %266 = vmatmul.f32.gmra.mxu0 %v190
      %v267 = vpop.f32.mrf.mxu0
      %v268 = vadd.f32 0.0, %v267
      %269 = vmatmul.f32.gmra.mxu0 %v193
      %v270 = vpop.f32.mrf.mxu0
      %v271 = vadd.f32 0.0, %v270
      %272 = vmatmul.f32.gmra.mxu0 %v196
      %v273 = vpop.f32.mrf.mxu0
      %v274 = vadd.f32 0.0, %v273
      %275 = vmatmul.f32.gmra.mxu0 %v199
      %v276 = vpop.f32.mrf.mxu0
      %v277 = vadd.f32 0.0, %v276
      %278 = vmatmul.f32.gmra.mxu0 %v202
      %v279 = vpop.f32.mrf.mxu0
      %v280 = vadd.f32 0.0, %v279
      %281 = vmatmul.f32.gmra.mxu0 %v205
      %v282 = vpop.f32.mrf.mxu0
      %v283 = vadd.f32 0.0, %v282
      %284 = vmatmul.f32.gmra.mxu0 %v208
      %v285 = vpop.f32.mrf.mxu0
      %v286 = vadd.f32 0.0, %v285
      %287 = vmatmul.f32.gmra.mxu0 %v211
      %v288 = vpop.f32.mrf.mxu0
      %v289 = vadd.f32 0.0, %v288
      %290 = vmatmul.f32.gmra.mxu0 %v214
      %v291 = vpop.f32.mrf.mxu0
      %v292 = vadd.f32 0.0, %v291
      %293 = vmatmul.f32.gmra.mxu0 %v217
      %v294 = vpop.f32.mrf.mxu0
      %v295 = vadd.f32 0.0, %v294
      %296 = vdwg.mxu0
      %297 = vmatpush.msra.mxu0 0.0
      %298 = vmatpush.msra.mxu0 0.0
      %299 = vmatpush.msra.mxu0 0.0
      %300 = vmatpush.msra.mxu0 0.0
      %301 = vmatpush.msra.mxu0 0.0
      %302 = vmatpush.msra.mxu0 0.0
      %303 = vmatpush.msra.mxu0 0.0
      %304 = vmatpush.msra.mxu0 0.0
      %305 = vmatpush.msra.mxu0 0.0
      %306 = vmatpush.msra.mxu0 0.0
      %307 = vmatpush.msra.mxu0 0.0
      %308 = vmatpush.msra.mxu0 0.0
      %309 = vmatpush.msra.mxu0 0.0
      %310 = vmatpush.msra.mxu0 0.0
      %311 = vmatpush.msra.mxu0 0.0
      %312 = vmatpush.msra.mxu0 %v224
      %313 = vmatmul.f32.gmra.mxu0 %v166
      %v314 = vpop.f32.mrf.mxu0
      %v315 = vadd.f32 0.0, %v314
      %316 = vmatmul.f32.gmra.mxu0 %v169
      %v317 = vpop.f32.mrf.mxu0
      %v318 = vadd.f32 0.0, %v317
      %319 = vmatmul.f32.gmra.mxu0 %v172
      %v320 = vpop.f32.mrf.mxu0
      %v321 = vadd.f32 0.0, %v320
      %322 = vmatmul.f32.gmra.mxu0 %v175
      %v323 = vpop.f32.mrf.mxu0
      %v324 = vadd.f32 0.0, %v323
      %325 = vmatmul.f32.gmra.mxu0 %v178
      %v326 = vpop.f32.mrf.mxu0
      %v327 = vadd.f32 0.0, %v326
      %328 = vmatmul.f32.gmra.mxu0 %v181
      %v329 = vpop.f32.mrf.mxu0
      %v330 = vadd.f32 0.0, %v329
      %331 = vmatmul.f32.gmra.mxu0 %v184
      %v332 = vpop.f32.mrf.mxu0
      %v333 = vadd.f32 0.0, %v332
      %334 = vmatmul.f32.gmra.mxu0 %v187
      %v335 = vpop.f32.mrf.mxu0
      %v336 = vadd.f32 0.0, %v335
      %337 = vmatmul.f32.gmra.mxu0 %v190
      %v338 = vpop.f32.mrf.mxu0
      %v339 = vadd.f32 0.0, %v338
      %340 = vmatmul.f32.gmra.mxu0 %v193
      %v341 = vpop.f32.mrf.mxu0
      %v342 = vadd.f32 0.0, %v341
      %343 = vmatmul.f32.gmra.mxu0 %v196
      %v344 = vpop.f32.mrf.mxu0
      %v345 = vadd.f32 0.0, %v344
      %346 = vmatmul.f32.gmra.mxu0 %v199
      %v347 = vpop.f32.mrf.mxu0
      %v348 = vadd.f32 0.0, %v347
      %349 = vmatmul.f32.gmra.mxu0 %v202
      %v350 = vpop.f32.mrf.mxu0
      %v351 = vadd.f32 0.0, %v350
      %352 = vmatmul.f32.gmra.mxu0 %v205
      %v353 = vpop.f32.mrf.mxu0
      %v354 = vadd.f32 0.0, %v353
      %355 = vmatmul.f32.gmra.mxu0 %v208
      %v356 = vpop.f32.mrf.mxu0
      %v357 = vadd.f32 0.0, %v356
      %358 = vmatmul.f32.gmra.mxu0 %v211
      %v359 = vpop.f32.mrf.mxu0
      %v360 = vadd.f32 0.0, %v359
      %361 = vmatmul.f32.gmra.mxu0 %v214
      %v362 = vpop.f32.mrf.mxu0
      %v363 = vadd.f32 0.0, %v362
      %364 = vmatmul.f32.gmra.mxu0 %v217
      %v365 = vpop.f32.mrf.mxu0
      %v366 = vadd.f32 0.0, %v365
      %367 = vdwg.mxu0
      %368 = vxpose.xlu0.b32.start [1/16] %v244, 128
      %369 = vxpose.xlu0.b32.cont [2/16] 0.0, 128
      %370 = vxpose.xlu0.b32.cont [3/16] 0.0, 128
      %371 = vxpose.xlu0.b32.cont [4/16] 0.0, 128
      %372 = vxpose.xlu0.b32.cont [5/16] 0.0, 128
      %373 = vxpose.xlu0.b32.cont [6/16] 0.0, 128
      %374 = vxpose.xlu0.b32.cont [7/16] 0.0, 128
      %375 = vxpose.xlu0.b32.cont [8/16] 0.0, 128
      %376 = vxpose.xlu0.b32.cont [9/16] 0.0, 128
      %377 = vxpose.xlu0.b32.cont [10/16] 0.0, 128
      %378 = vxpose.xlu0.b32.cont [11/16] 0.0, 128
      %379 = vxpose.xlu0.b32.cont [12/16] 0.0, 128
      %380 = vxpose.xlu0.b32.cont [13/16] 0.0, 128
      %381 = vxpose.xlu0.b32.cont [14/16] 0.0, 128
      %382 = vxpose.xlu0.b32.cont [15/16] 0.0, 128
      %383 = vxpose.xlu0.b32.end [16/16] 0.0, 128
      %v384 = vpop.trf.xlu0
      %v385 = vpop.trf.xlu0
      %v386 = vpop.trf.xlu0
      %v387 = vpop.trf.xlu0
      %v388 = vpop.trf.xlu0
      %v389 = vpop.trf.xlu0
      %v390 = vpop.trf.xlu0
      %v391 = vpop.trf.xlu0
      %v392 = vpop.trf.xlu0
      %v393 = vpop.trf.xlu0
      %v394 = vpop.trf.xlu0
      %v395 = vpop.trf.xlu0
      %v396 = vpop.trf.xlu0
      %v397 = vpop.trf.xlu0
      %v398 = vpop.trf.xlu0
      %v399 = vpop.trf.xlu0
      %400 = vxpose.xlu0.b32.start [1/16] %v315, 128
      %401 = vxpose.xlu0.b32.cont [2/16] 0.0, 128
      %402 = vxpose.xlu0.b32.cont [3/16] 0.0, 128
      %403 = vxpose.xlu0.b32.cont [4/16] 0.0, 128
      %404 = vxpose.xlu0.b32.cont [5/16] 0.0, 128
      %405 = vxpose.xlu0.b32.cont [6/16] 0.0, 128
      %406 = vxpose.xlu0.b32.cont [7/16] 0.0, 128
      %407 = vxpose.xlu0.b32.cont [8/16] 0.0, 128
      %408 = vxpose.xlu0.b32.cont [9/16] 0.0, 128
      %409 = vxpose.xlu0.b32.cont [10/16] 0.0, 128
      %410 = vxpose.xlu0.b32.cont [11/16] 0.0, 128
      %411 = vxpose.xlu0.b32.cont [12/16] 0.0, 128
      %412 = vxpose.xlu0.b32.cont [13/16] 0.0, 128
      %413 = vxpose.xlu0.b32.cont [14/16] 0.0, 128
      %414 = vxpose.xlu0.b32.cont [15/16] 0.0, 128
      %415 = vxpose.xlu0.b32.end [16/16] 0.0, 128
      %v416 = vpop.trf.xlu0
      %v417 = vpop.trf.xlu0
      %v418 = vpop.trf.xlu0
      %v419 = vpop.trf.xlu0
      %v420 = vpop.trf.xlu0
      %v421 = vpop.trf.xlu0
      %v422 = vpop.trf.xlu0
      %v423 = vpop.trf.xlu0
      %v424 = vpop.trf.xlu0
      %v425 = vpop.trf.xlu0
      %v426 = vpop.trf.xlu0
      %v427 = vpop.trf.xlu0
      %v428 = vpop.trf.xlu0
      %v429 = vpop.trf.xlu0
      %v430 = vpop.trf.xlu0
      %v431 = vpop.trf.xlu0
      %vm432 = vcmask 64512
      %v434 = vsel %vm432, %v384, 0
      %v437 = vsel %vm432, %v385, 0
      %v440 = vsel %vm432, %v386, 0
      %v443 = vsel %vm432, %v387, 0
      %v446 = vsel %vm432, %v388, 0
      %v449 = vsel %vm432, %v389, 0
      %v452 = vsel %vm432, %v390, 0
      %v455 = vsel %vm432, %v391, 0
      %v458 = vsel %vm432, %v392, 0
      %v461 = vsel %vm432, %v393, 0
      %v464 = vsel %vm432, %v394, 0
      %v467 = vsel %vm432, %v395, 0
      %v470 = vsel %vm432, %v396, 0
      %v473 = vsel %vm432, %v397, 0
      %v476 = vsel %vm432, %v398, 0
      %v479 = vsel %vm432, %v399, 0
      %v482 = vsel %vm432, %v416, 0
      %v485 = vsel %vm432, %v417, 0
      %v488 = vsel %vm432, %v418, 0
      %v491 = vsel %vm432, %v419, 0
      %v494 = vsel %vm432, %v420, 0
      %v497 = vsel %vm432, %v421, 0
      %v500 = vsel %vm432, %v422, 0
      %v503 = vsel %vm432, %v423, 0
      %v506 = vsel %vm432, %v424, 0
      %v509 = vsel %vm432, %v425, 0
      %v512 = vsel %vm432, %v426, 0
      %v515 = vsel %vm432, %v427, 0
      %v518 = vsel %vm432, %v428, 0
      %v521 = vsel %vm432, %v429, 0
      %v524 = vsel %vm432, %v430, 0
      %v527 = vsel %vm432, %v431, 0
      %529 = vmatpush.msra.mxu0 0.0
      %530 = vmatpush.msra.mxu0 0.0
      %531 = vmatpush.msra.mxu0 0.0
      %532 = vmatpush.msra.mxu0 0.0
      %533 = vmatpush.msra.mxu0 0.0
      %534 = vmatpush.msra.mxu0 0.0
      %535 = vmatpush.msra.mxu0 0.0
      %536 = vmatpush.msra.mxu0 0.0
      %537 = vmatpush.msra.mxu0 0.0
      %538 = vmatpush.msra.mxu0 0.0
      %539 = vmatpush.msra.mxu0 0.0
      %540 = vmatpush.msra.mxu0 0.0
      %541 = vmatpush.msra.mxu0 0.0
      %542 = vmatpush.msra.mxu0 0.0
      %543 = vmatpush.msra.mxu0 0.0
      %544 = vmatpush.msra.mxu0 %v247
      %545 = vmatmul.f32.gmra.mxu0 %v434
      %v546 = vpop.f32.mrf.mxu0
      %v547 = vadd.f32 0.0, %v546
      %548 = vmatmul.f32.gmra.mxu0 %v437
      %v549 = vpop.f32.mrf.mxu0
      %v550 = vadd.f32 0.0, %v549
      %551 = vmatmul.f32.gmra.mxu0 %v440
      %v552 = vpop.f32.mrf.mxu0
      %v553 = vadd.f32 0.0, %v552
      %554 = vmatmul.f32.gmra.mxu0 %v443
      %v555 = vpop.f32.mrf.mxu0
      %v556 = vadd.f32 0.0, %v555
      %557 = vmatmul.f32.gmra.mxu0 %v446
      %v558 = vpop.f32.mrf.mxu0
      %v559 = vadd.f32 0.0, %v558
      %560 = vmatmul.f32.gmra.mxu0 %v449
      %v561 = vpop.f32.mrf.mxu0
      %v562 = vadd.f32 0.0, %v561
      %563 = vmatmul.f32.gmra.mxu0 %v452
      %v564 = vpop.f32.mrf.mxu0
      %v565 = vadd.f32 0.0, %v564
      %566 = vmatmul.f32.gmra.mxu0 %v455
      %v567 = vpop.f32.mrf.mxu0
      %v568 = vadd.f32 0.0, %v567
      %569 = vmatmul.f32.gmra.mxu0 %v458
      %v570 = vpop.f32.mrf.mxu0
      %v571 = vadd.f32 0.0, %v570
      %572 = vmatmul.f32.gmra.mxu0 %v461
      %v573 = vpop.f32.mrf.mxu0
      %v574 = vadd.f32 0.0, %v573
      %575 = vmatmul.f32.gmra.mxu0 %v464
      %v576 = vpop.f32.mrf.mxu0
      %v577 = vadd.f32 0.0, %v576
      %578 = vmatmul.f32.gmra.mxu0 %v467
      %v579 = vpop.f32.mrf.mxu0
      %v580 = vadd.f32 0.0, %v579
      %581 = vmatmul.f32.gmra.mxu0 %v470
      %v582 = vpop.f32.mrf.mxu0
      %v583 = vadd.f32 0.0, %v582
      %584 = vmatmul.f32.gmra.mxu0 %v473
      %v585 = vpop.f32.mrf.mxu0
      %v586 = vadd.f32 0.0, %v585
      %587 = vmatmul.f32.gmra.mxu0 %v476
      %v588 = vpop.f32.mrf.mxu0
      %v589 = vadd.f32 0.0, %v588
      %590 = vmatmul.f32.gmra.mxu0 %v479
      %v591 = vpop.f32.mrf.mxu0
      %v592 = vadd.f32 0.0, %v591
      %593 = vmatmul.f32.gmra.mxu0 %v482
      %v594 = vpop.f32.mrf.mxu0
      %v595 = vadd.f32 0.0, %v594
      %596 = vmatmul.f32.gmra.mxu0 %v485
      %v597 = vpop.f32.mrf.mxu0
      %v598 = vadd.f32 0.0, %v597
      %599 = vmatmul.f32.gmra.mxu0 %v488
      %v600 = vpop.f32.mrf.mxu0
      %v601 = vadd.f32 0.0, %v600
      %602 = vmatmul.f32.gmra.mxu0 %v491
      %v603 = vpop.f32.mrf.mxu0
      %v604 = vadd.f32 0.0, %v603
      %605 = vmatmul.f32.gmra.mxu0 %v494
      %v606 = vpop.f32.mrf.mxu0
      %v607 = vadd.f32 0.0, %v606
      %608 = vmatmul.f32.gmra.mxu0 %v497
      %v609 = vpop.f32.mrf.mxu0
      %v610 = vadd.f32 0.0, %v609
      %611 = vmatmul.f32.gmra.mxu0 %v500
      %v612 = vpop.f32.mrf.mxu0
      %v613 = vadd.f32 0.0, %v612
      %614 = vmatmul.f32.gmra.mxu0 %v503
      %v615 = vpop.f32.mrf.mxu0
      %v616 = vadd.f32 0.0, %v615
      %617 = vmatmul.f32.gmra.mxu0 %v506
      %v618 = vpop.f32.mrf.mxu0
      %v619 = vadd.f32 0.0, %v618
      %620 = vmatmul.f32.gmra.mxu0 %v509
      %v621 = vpop.f32.mrf.mxu0
      %v622 = vadd.f32 0.0, %v621
      %623 = vmatmul.f32.gmra.mxu0 %v512
      %v624 = vpop.f32.mrf.mxu0
      %v625 = vadd.f32 0.0, %v624
      %626 = vmatmul.f32.gmra.mxu0 %v515
      %v627 = vpop.f32.mrf.mxu0
      %v628 = vadd.f32 0.0, %v627
      %629 = vmatmul.f32.gmra.mxu0 %v518
      %v630 = vpop.f32.mrf.mxu0
      %v631 = vadd.f32 0.0, %v630
      %632 = vmatmul.f32.gmra.mxu0 %v521
      %v633 = vpop.f32.mrf.mxu0
      %v634 = vadd.f32 0.0, %v633
      %635 = vmatmul.f32.gmra.mxu0 %v524
      %v636 = vpop.f32.mrf.mxu0
      %v637 = vadd.f32 0.0, %v636
      %638 = vmatmul.f32.gmra.mxu0 %v527
      %v639 = vpop.f32.mrf.mxu0
      %v640 = vadd.f32 0.0, %v639
      %641 = vdwg.mxu0
      %642 = vmatpush.msra.mxu0 0.0
      %643 = vmatpush.msra.mxu0 0.0
      %644 = vmatpush.msra.mxu0 0.0
      %645 = vmatpush.msra.mxu0 0.0
      %646 = vmatpush.msra.mxu0 0.0
      %647 = vmatpush.msra.mxu0 0.0
      %648 = vmatpush.msra.mxu0 0.0
      %649 = vmatpush.msra.mxu0 0.0
      %650 = vmatpush.msra.mxu0 0.0
      %651 = vmatpush.msra.mxu0 0.0
      %652 = vmatpush.msra.mxu0 0.0
      %653 = vmatpush.msra.mxu0 0.0
      %654 = vmatpush.msra.mxu0 0.0
      %655 = vmatpush.msra.mxu0 0.0
      %656 = vmatpush.msra.mxu0 0.0
      %657 = vmatpush.msra.mxu0 %v318
      %658 = vmatmul.f32.gmra.mxu0 %v434
      %v659 = vpop.f32.mrf.mxu0
      %v660 = vadd.f32 0.0, %v659
      %661 = vmatmul.f32.gmra.mxu0 %v437
      %v662 = vpop.f32.mrf.mxu0
      %v663 = vadd.f32 0.0, %v662
      %664 = vmatmul.f32.gmra.mxu0 %v440
      %v665 = vpop.f32.mrf.mxu0
      %v666 = vadd.f32 0.0, %v665
      %667 = vmatmul.f32.gmra.mxu0 %v443
      %v668 = vpop.f32.mrf.mxu0
      %v669 = vadd.f32 0.0, %v668
      %670 = vmatmul.f32.gmra.mxu0 %v446
      %v671 = vpop.f32.mrf.mxu0
      %v672 = vadd.f32 0.0, %v671
      %673 = vmatmul.f32.gmra.mxu0 %v449
      %v674 = vpop.f32.mrf.mxu0
      %v675 = vadd.f32 0.0, %v674
      %676 = vmatmul.f32.gmra.mxu0 %v452
      %v677 = vpop.f32.mrf.mxu0
      %v678 = vadd.f32 0.0, %v677
      %679 = vmatmul.f32.gmra.mxu0 %v455
      %v680 = vpop.f32.mrf.mxu0
      %v681 = vadd.f32 0.0, %v680
      %682 = vmatmul.f32.gmra.mxu0 %v458
      %v683 = vpop.f32.mrf.mxu0
      %v684 = vadd.f32 0.0, %v683
      %685 = vmatmul.f32.gmra.mxu0 %v461
      %v686 = vpop.f32.mrf.mxu0
      %v687 = vadd.f32 0.0, %v686
      %688 = vmatmul.f32.gmra.mxu0 %v464
      %v689 = vpop.f32.mrf.mxu0
      %v690 = vadd.f32 0.0, %v689
      %691 = vmatmul.f32.gmra.mxu0 %v467
      %v692 = vpop.f32.mrf.mxu0
      %v693 = vadd.f32 0.0, %v692
      %694 = vmatmul.f32.gmra.mxu0 %v470
      %v695 = vpop.f32.mrf.mxu0
      %v696 = vadd.f32 0.0, %v695
      %697 = vmatmul.f32.gmra.mxu0 %v473
      %v698 = vpop.f32.mrf.mxu0
      %v699 = vadd.f32 0.0, %v698
      %700 = vmatmul.f32.gmra.mxu0 %v476
      %v701 = vpop.f32.mrf.mxu0
      %v702 = vadd.f32 0.0, %v701
      %703 = vmatmul.f32.gmra.mxu0 %v479
      %v704 = vpop.f32.mrf.mxu0
      %v705 = vadd.f32 0.0, %v704
      %706 = vmatmul.f32.gmra.mxu0 %v482
      %v707 = vpop.f32.mrf.mxu0
      %v708 = vadd.f32 0.0, %v707
      %709 = vmatmul.f32.gmra.mxu0 %v485
      %v710 = vpop.f32.mrf.mxu0
      %v711 = vadd.f32 0.0, %v710
      %712 = vmatmul.f32.gmra.mxu0 %v488
      %v713 = vpop.f32.mrf.mxu0
      %v714 = vadd.f32 0.0, %v713
      %715 = vmatmul.f32.gmra.mxu0 %v491
      %v716 = vpop.f32.mrf.mxu0
      %v717 = vadd.f32 0.0, %v716
      %718 = vmatmul.f32.gmra.mxu0 %v494
      %v719 = vpop.f32.mrf.mxu0
      %v720 = vadd.f32 0.0, %v719
      %721 = vmatmul.f32.gmra.mxu0 %v497
      %v722 = vpop.f32.mrf.mxu0
      %v723 = vadd.f32 0.0, %v722
      %724 = vmatmul.f32.gmra.mxu0 %v500
      %v725 = vpop.f32.mrf.mxu0
      %v726 = vadd.f32 0.0, %v725
      %727 = vmatmul.f32.gmra.mxu0 %v503
      %v728 = vpop.f32.mrf.mxu0
      %v729 = vadd.f32 0.0, %v728
      %730 = vmatmul.f32.gmra.mxu0 %v506
      %v731 = vpop.f32.mrf.mxu0
      %v732 = vadd.f32 0.0, %v731
      %733 = vmatmul.f32.gmra.mxu0 %v509
      %v734 = vpop.f32.mrf.mxu0
      %v735 = vadd.f32 0.0, %v734
      %736 = vmatmul.f32.gmra.mxu0 %v512
      %v737 = vpop.f32.mrf.mxu0
      %v738 = vadd.f32 0.0, %v737
      %739 = vmatmul.f32.gmra.mxu0 %v515
      %v740 = vpop.f32.mrf.mxu0
      %v741 = vadd.f32 0.0, %v740
      %742 = vmatmul.f32.gmra.mxu0 %v518
      %v743 = vpop.f32.mrf.mxu0
      %v744 = vadd.f32 0.0, %v743
      %745 = vmatmul.f32.gmra.mxu0 %v521
      %v746 = vpop.f32.mrf.mxu0
      %v747 = vadd.f32 0.0, %v746
      %748 = vmatmul.f32.gmra.mxu0 %v524
      %v749 = vpop.f32.mrf.mxu0
      %v750 = vadd.f32 0.0, %v749
      %751 = vmatmul.f32.gmra.mxu0 %v527
      %v752 = vpop.f32.mrf.mxu0
      %v753 = vadd.f32 0.0, %v752
      %754 = vdwg.mxu0
      %v755 = vmax.f32 %v547, %v660
      %756 = vmax.xlane.f32.xlu0 %v755
      %v757 = vpop.xlane.xlu0 %756
      %v758 = vmax.f32 %v550, %v663
      %759 = vmax.xlane.f32.xlu0 %v758
      %v760 = vpop.xlane.xlu0 %759
      %v761 = vmax.f32 %v553, %v666
      %762 = vmax.xlane.f32.xlu0 %v761
      %v763 = vpop.xlane.xlu0 %762
      %v764 = vmax.f32 %v556, %v669
      %765 = vmax.xlane.f32.xlu0 %v764
      %v766 = vpop.xlane.xlu0 %765
      %v767 = vmax.f32 %v559, %v672
      %768 = vmax.xlane.f32.xlu0 %v767
      %v769 = vpop.xlane.xlu0 %768
      %v770 = vmax.f32 %v562, %v675
      %771 = vmax.xlane.f32.xlu0 %v770
      %v772 = vpop.xlane.xlu0 %771
      %v773 = vmax.f32 %v565, %v678
      %774 = vmax.xlane.f32.xlu0 %v773
      %v775 = vpop.xlane.xlu0 %774
      %v776 = vmax.f32 %v568, %v681
      %777 = vmax.xlane.f32.xlu0 %v776
      %v778 = vpop.xlane.xlu0 %777
      %v779 = vmax.f32 %v571, %v684
      %780 = vmax.xlane.f32.xlu0 %v779
      %v781 = vpop.xlane.xlu0 %780
      %v782 = vmax.f32 %v574, %v687
      %783 = vmax.xlane.f32.xlu0 %v782
      %v784 = vpop.xlane.xlu0 %783
      %v785 = vmax.f32 %v577, %v690
      %786 = vmax.xlane.f32.xlu0 %v785
      %v787 = vpop.xlane.xlu0 %786
      %v788 = vmax.f32 %v580, %v693
      %789 = vmax.xlane.f32.xlu0 %v788
      %v790 = vpop.xlane.xlu0 %789
      %v791 = vmax.f32 %v583, %v696
      %792 = vmax.xlane.f32.xlu0 %v791
      %v793 = vpop.xlane.xlu0 %792
      %v794 = vmax.f32 %v586, %v699
      %795 = vmax.xlane.f32.xlu0 %v794
      %v796 = vpop.xlane.xlu0 %795
      %v797 = vmax.f32 %v589, %v702
      %798 = vmax.xlane.f32.xlu0 %v797
      %v799 = vpop.xlane.xlu0 %798
      %v800 = vmax.f32 %v592, %v705
      %801 = vmax.xlane.f32.xlu0 %v800
      %v802 = vpop.xlane.xlu0 %801
      %v803 = vmax.f32 %v595, %v708
      %804 = vmax.xlane.f32.xlu0 %v803
      %v805 = vpop.xlane.xlu0 %804
      %v806 = vmax.f32 %v598, %v711
      %807 = vmax.xlane.f32.xlu0 %v806
      %v808 = vpop.xlane.xlu0 %807
      %v809 = vmax.f32 %v601, %v714
      %810 = vmax.xlane.f32.xlu0 %v809
      %v811 = vpop.xlane.xlu0 %810
      %v812 = vmax.f32 %v604, %v717
      %813 = vmax.xlane.f32.xlu0 %v812
      %v814 = vpop.xlane.xlu0 %813
      %v815 = vmax.f32 %v607, %v720
      %816 = vmax.xlane.f32.xlu0 %v815
      %v817 = vpop.xlane.xlu0 %816
      %v818 = vmax.f32 %v610, %v723
      %819 = vmax.xlane.f32.xlu0 %v818
      %v820 = vpop.xlane.xlu0 %819
      %v821 = vmax.f32 %v613, %v726
      %822 = vmax.xlane.f32.xlu0 %v821
      %v823 = vpop.xlane.xlu0 %822
      %v824 = vmax.f32 %v616, %v729
      %825 = vmax.xlane.f32.xlu0 %v824
      %v826 = vpop.xlane.xlu0 %825
      %v827 = vmax.f32 %v619, %v732
      %828 = vmax.xlane.f32.xlu0 %v827
      %v829 = vpop.xlane.xlu0 %828
      %v830 = vmax.f32 %v622, %v735
      %831 = vmax.xlane.f32.xlu0 %v830
      %v832 = vpop.xlane.xlu0 %831
      %v833 = vmax.f32 %v625, %v738
      %834 = vmax.xlane.f32.xlu0 %v833
      %v835 = vpop.xlane.xlu0 %834
      %v836 = vmax.f32 %v628, %v741
      %837 = vmax.xlane.f32.xlu0 %v836
      %v838 = vpop.xlane.xlu0 %837
      %v839 = vmax.f32 %v631, %v744
      %840 = vmax.xlane.f32.xlu0 %v839
      %v841 = vpop.xlane.xlu0 %840
      %v842 = vmax.f32 %v634, %v747
      %843 = vmax.xlane.f32.xlu0 %v842
      %v844 = vpop.xlane.xlu0 %843
      %v845 = vmax.f32 %v637, %v750
      %846 = vmax.xlane.f32.xlu0 %v845
      %v847 = vpop.xlane.xlu0 %846
      %v848 = vmax.f32 %v640, %v753
      %849 = vmax.xlane.f32.xlu0 %v848
      %v850 = vpop.xlane.xlu0 %849
      %v851 = vsub.f32 %v547, %v757
      %v852 = vsub.f32 %v660, %v757
      %v853 = vsub.f32 %v550, %v760
      %v854 = vsub.f32 %v663, %v760
      %v855 = vsub.f32 %v553, %v763
      %v856 = vsub.f32 %v666, %v763
      %v857 = vsub.f32 %v556, %v766
      %v858 = vsub.f32 %v669, %v766
      %v859 = vsub.f32 %v559, %v769
      %v860 = vsub.f32 %v672, %v769
      %v861 = vsub.f32 %v562, %v772
      %v862 = vsub.f32 %v675, %v772
      %v863 = vsub.f32 %v565, %v775
      %v864 = vsub.f32 %v678, %v775
      %v865 = vsub.f32 %v568, %v778
      %v866 = vsub.f32 %v681, %v778
      %v867 = vsub.f32 %v571, %v781
      %v868 = vsub.f32 %v684, %v781
      %v869 = vsub.f32 %v574, %v784
      %v870 = vsub.f32 %v687, %v784
      %v871 = vsub.f32 %v577, %v787
      %v872 = vsub.f32 %v690, %v787
      %v873 = vsub.f32 %v580, %v790
      %v874 = vsub.f32 %v693, %v790
      %v875 = vsub.f32 %v583, %v793
      %v876 = vsub.f32 %v696, %v793
      %v877 = vsub.f32 %v586, %v796
      %v878 = vsub.f32 %v699, %v796
      %v879 = vsub.f32 %v589, %v799
      %v880 = vsub.f32 %v702, %v799
      %v881 = vsub.f32 %v592, %v802
      %v882 = vsub.f32 %v705, %v802
      %v883 = vsub.f32 %v595, %v805
      %v884 = vsub.f32 %v708, %v805
      %v885 = vsub.f32 %v598, %v808
      %v886 = vsub.f32 %v711, %v808
      %v887 = vsub.f32 %v601, %v811
      %v888 = vsub.f32 %v714, %v811
      %v889 = vsub.f32 %v604, %v814
      %v890 = vsub.f32 %v717, %v814
      %v891 = vsub.f32 %v607, %v817
      %v892 = vsub.f32 %v720, %v817
      %v893 = vsub.f32 %v610, %v820
      %v894 = vsub.f32 %v723, %v820
      %v895 = vsub.f32 %v613, %v823
      %v896 = vsub.f32 %v726, %v823
      %v897 = vsub.f32 %v616, %v826
      %v898 = vsub.f32 %v729, %v826
      %v899 = vsub.f32 %v619, %v829
      %v900 = vsub.f32 %v732, %v829
      %v901 = vsub.f32 %v622, %v832
      %v902 = vsub.f32 %v735, %v832
      %v903 = vsub.f32 %v625, %v835
      %v904 = vsub.f32 %v738, %v835
      %v905 = vsub.f32 %v628, %v838
      %v906 = vsub.f32 %v741, %v838
      %v907 = vsub.f32 %v631, %v841
      %v908 = vsub.f32 %v744, %v841
      %v909 = vsub.f32 %v634, %v844
      %v910 = vsub.f32 %v747, %v844
      %v911 = vsub.f32 %v637, %v847
      %v912 = vsub.f32 %v750, %v847
      %v913 = vsub.f32 %v640, %v850
      %v914 = vsub.f32 %v753, %v850
      %v915 = vmul.f32 %v851, 1.442695
      %v916 = vpow.pop %v915
      %v917 = vmul.f32 %v852, 1.442695
      %v918 = vpow.pop %v917
      %v919 = vmul.f32 %v853, 1.442695
      %v920 = vpow.pop %v919
      %v921 = vmul.f32 %v854, 1.442695
      %v922 = vpow.pop %v921
      %v923 = vmul.f32 %v855, 1.442695
      %v924 = vpow.pop %v923
      %v925 = vmul.f32 %v856, 1.442695
      %v926 = vpow.pop %v925
      %v927 = vmul.f32 %v857, 1.442695
      %v928 = vpow.pop %v927
      %v929 = vmul.f32 %v858, 1.442695
      %v930 = vpow.pop %v929
      %v931 = vmul.f32 %v859, 1.442695
      %v932 = vpow.pop %v931
      %v933 = vmul.f32 %v860, 1.442695
      %v934 = vpow.pop %v933
      %v935 = vmul.f32 %v861, 1.442695
      %v936 = vpow.pop %v935
      %v937 = vmul.f32 %v862, 1.442695
      %v938 = vpow.pop %v937
      %v939 = vmul.f32 %v863, 1.442695
      %v940 = vpow.pop %v939
      %v941 = vmul.f32 %v864, 1.442695
      %v942 = vpow.pop %v941
      %v943 = vmul.f32 %v865, 1.442695
      %v944 = vpow.pop %v943
      %v945 = vmul.f32 %v866, 1.442695
      %v946 = vpow.pop %v945
      %v947 = vmul.f32 %v867, 1.442695
      %v948 = vpow.pop %v947
      %v949 = vmul.f32 %v868, 1.442695
      %v950 = vpow.pop %v949
      %v951 = vmul.f32 %v869, 1.442695
      %v952 = vpow.pop %v951
      %v953 = vmul.f32 %v870, 1.442695
      %v954 = vpow.pop %v953
      %v955 = vmul.f32 %v871, 1.442695
      %v956 = vpow.pop %v955
      %v957 = vmul.f32 %v872, 1.442695
      %v958 = vpow.pop %v957
      %v959 = vmul.f32 %v873, 1.442695
      %v960 = vpow.pop %v959
      %v961 = vmul.f32 %v874, 1.442695
      %v962 = vpow.pop %v961
      %v963 = vmul.f32 %v875, 1.442695
      %v964 = vpow.pop %v963
      %v965 = vmul.f32 %v876, 1.442695
      %v966 = vpow.pop %v965
      %v967 = vmul.f32 %v877, 1.442695
      %v968 = vpow.pop %v967
      %v969 = vmul.f32 %v878, 1.442695
      %v970 = vpow.pop %v969
      %v971 = vmul.f32 %v879, 1.442695
      %v972 = vpow.pop %v971
      %v973 = vmul.f32 %v880, 1.442695
      %v974 = vpow.pop %v973
      %v975 = vmul.f32 %v881, 1.442695
      %v976 = vpow.pop %v975
      %v977 = vmul.f32 %v882, 1.442695
      %v978 = vpow.pop %v977
      %v979 = vmul.f32 %v883, 1.442695
      %v980 = vpow.pop %v979
      %v981 = vmul.f32 %v884, 1.442695
      %v982 = vpow.pop %v981
      %v983 = vmul.f32 %v885, 1.442695
      %v984 = vpow.pop %v983
      %v985 = vmul.f32 %v886, 1.442695
      %v986 = vpow.pop %v985
      %v987 = vmul.f32 %v887, 1.442695
      %v988 = vpow.pop %v987
      %v989 = vmul.f32 %v888, 1.442695
      %v990 = vpow.pop %v989
      %v991 = vmul.f32 %v889, 1.442695
      %v992 = vpow.pop %v991
      %v993 = vmul.f32 %v890, 1.442695
      %v994 = vpow.pop %v993
      %v995 = vmul.f32 %v891, 1.442695
      %v996 = vpow.pop %v995
      %v997 = vmul.f32 %v892, 1.442695
      %v998 = vpow.pop %v997
      %v999 = vmul.f32 %v893, 1.442695
      %v1000 = vpow.pop %v999
      %v1001 = vmul.f32 %v894, 1.442695
      %v1002 = vpow.pop %v1001
      %v1003 = vmul.f32 %v895, 1.442695
      %v1004 = vpow.pop %v1003
      %v1005 = vmul.f32 %v896, 1.442695
      %v1006 = vpow.pop %v1005
      %v1007 = vmul.f32 %v897, 1.442695
      %v1008 = vpow.pop %v1007
      %v1009 = vmul.f32 %v898, 1.442695
      %v1010 = vpow.pop %v1009
      %v1011 = vmul.f32 %v899, 1.442695
      %v1012 = vpow.pop %v1011
      %v1013 = vmul.f32 %v900, 1.442695
      %v1014 = vpow.pop %v1013
      %v1015 = vmul.f32 %v901, 1.442695
      %v1016 = vpow.pop %v1015
      %v1017 = vmul.f32 %v902, 1.442695
      %v1018 = vpow.pop %v1017
      %v1019 = vmul.f32 %v903, 1.442695
      %v1020 = vpow.pop %v1019
      %v1021 = vmul.f32 %v904, 1.442695
      %v1022 = vpow.pop %v1021
      %v1023 = vmul.f32 %v905, 1.442695
      %v1024 = vpow.pop %v1023
      %v1025 = vmul.f32 %v906, 1.442695
      %v1026 = vpow.pop %v1025
      %v1027 = vmul.f32 %v907, 1.442695
      %v1028 = vpow.pop %v1027
      %v1029 = vmul.f32 %v908, 1.442695
      %v1030 = vpow.pop %v1029
      %v1031 = vmul.f32 %v909, 1.442695
      %v1032 = vpow.pop %v1031
      %v1033 = vmul.f32 %v910, 1.442695
      %v1034 = vpow.pop %v1033
      %v1035 = vmul.f32 %v911, 1.442695
      %v1036 = vpow.pop %v1035
      %v1037 = vmul.f32 %v912, 1.442695
      %v1038 = vpow.pop %v1037
      %v1039 = vmul.f32 %v913, 1.442695
      %v1040 = vpow.pop %v1039
      %v1041 = vmul.f32 %v914, 1.442695
      %v1042 = vpow.pop %v1041
      %v1043 = vadd.f32 %v916, %v918
      %1044 = vadd.xlane.f32.xlu0 %v1043
      %v1045 = vpop.xlane.xlu0 %1044
      %v1046 = vadd.f32 %v920, %v922
      %1047 = vadd.xlane.f32.xlu0 %v1046
      %v1048 = vpop.xlane.xlu0 %1047
      %v1049 = vadd.f32 %v924, %v926
      %1050 = vadd.xlane.f32.xlu0 %v1049
      %v1051 = vpop.xlane.xlu0 %1050
      %v1052 = vadd.f32 %v928, %v930
      %1053 = vadd.xlane.f32.xlu0 %v1052
      %v1054 = vpop.xlane.xlu0 %1053
      %v1055 = vadd.f32 %v932, %v934
      %1056 = vadd.xlane.f32.xlu0 %v1055
      %v1057 = vpop.xlane.xlu0 %1056
      %v1058 = vadd.f32 %v936, %v938
      %1059 = vadd.xlane.f32.xlu0 %v1058
      %v1060 = vpop.xlane.xlu0 %1059
      %v1061 = vadd.f32 %v940, %v942
      %1062 = vadd.xlane.f32.xlu0 %v1061
      %v1063 = vpop.xlane.xlu0 %1062
      %v1064 = vadd.f32 %v944, %v946
      %1065 = vadd.xlane.f32.xlu0 %v1064
      %v1066 = vpop.xlane.xlu0 %1065
      %v1067 = vadd.f32 %v948, %v950
      %1068 = vadd.xlane.f32.xlu0 %v1067
      %v1069 = vpop.xlane.xlu0 %1068
      %v1070 = vadd.f32 %v952, %v954
      %1071 = vadd.xlane.f32.xlu0 %v1070
      %v1072 = vpop.xlane.xlu0 %1071
      %v1073 = vadd.f32 %v956, %v958
      %1074 = vadd.xlane.f32.xlu0 %v1073
      %v1075 = vpop.xlane.xlu0 %1074
      %v1076 = vadd.f32 %v960, %v962
      %1077 = vadd.xlane.f32.xlu0 %v1076
      %v1078 = vpop.xlane.xlu0 %1077
      %v1079 = vadd.f32 %v964, %v966
      %1080 = vadd.xlane.f32.xlu0 %v1079
      %v1081 = vpop.xlane.xlu0 %1080
      %v1082 = vadd.f32 %v968, %v970
      %1083 = vadd.xlane.f32.xlu0 %v1082
      %v1084 = vpop.xlane.xlu0 %1083
      %v1085 = vadd.f32 %v972, %v974
      %1086 = vadd.xlane.f32.xlu0 %v1085
      %v1087 = vpop.xlane.xlu0 %1086
      %v1088 = vadd.f32 %v976, %v978
      %1089 = vadd.xlane.f32.xlu0 %v1088
      %v1090 = vpop.xlane.xlu0 %1089
      %v1091 = vadd.f32 %v980, %v982
      %1092 = vadd.xlane.f32.xlu0 %v1091
      %v1093 = vpop.xlane.xlu0 %1092
      %v1094 = vadd.f32 %v984, %v986
      %1095 = vadd.xlane.f32.xlu0 %v1094
      %v1096 = vpop.xlane.xlu0 %1095
      %v1097 = vadd.f32 %v988, %v990
      %1098 = vadd.xlane.f32.xlu0 %v1097
      %v1099 = vpop.xlane.xlu0 %1098
      %v1100 = vadd.f32 %v992, %v994
      %1101 = vadd.xlane.f32.xlu0 %v1100
      %v1102 = vpop.xlane.xlu0 %1101
      %v1103 = vadd.f32 %v996, %v998
      %1104 = vadd.xlane.f32.xlu0 %v1103
      %v1105 = vpop.xlane.xlu0 %1104
      %v1106 = vadd.f32 %v1000, %v1002
      %1107 = vadd.xlane.f32.xlu0 %v1106
      %v1108 = vpop.xlane.xlu0 %1107
      %v1109 = vadd.f32 %v1004, %v1006
      %1110 = vadd.xlane.f32.xlu0 %v1109
      %v1111 = vpop.xlane.xlu0 %1110
      %v1112 = vadd.f32 %v1008, %v1010
      %1113 = vadd.xlane.f32.xlu0 %v1112
      %v1114 = vpop.xlane.xlu0 %1113
      %v1115 = vadd.f32 %v1012, %v1014
      %1116 = vadd.xlane.f32.xlu0 %v1115
      %v1117 = vpop.xlane.xlu0 %1116
      %v1118 = vadd.f32 %v1016, %v1018
      %1119 = vadd.xlane.f32.xlu0 %v1118
      %v1120 = vpop.xlane.xlu0 %1119
      %v1121 = vadd.f32 %v1020, %v1022
      %1122 = vadd.xlane.f32.xlu0 %v1121
      %v1123 = vpop.xlane.xlu0 %1122
      %v1124 = vadd.f32 %v1024, %v1026
      %1125 = vadd.xlane.f32.xlu0 %v1124
      %v1126 = vpop.xlane.xlu0 %1125
      %v1127 = vadd.f32 %v1028, %v1030
      %1128 = vadd.xlane.f32.xlu0 %v1127
      %v1129 = vpop.xlane.xlu0 %1128
      %v1130 = vadd.f32 %v1032, %v1034
      %1131 = vadd.xlane.f32.xlu0 %v1130
      %v1132 = vpop.xlane.xlu0 %1131
      %v1133 = vadd.f32 %v1036, %v1038
      %1134 = vadd.xlane.f32.xlu0 %v1133
      %v1135 = vpop.xlane.xlu0 %1134
      %v1136 = vadd.f32 %v1040, %v1042
      %1137 = vadd.xlane.f32.xlu0 %v1136
      %v1138 = vpop.xlane.xlu0 %1137
      %1139 = vmatpush.xpose.msra.mxu0 %v976
      %1140 = vmatpush.xpose.msra.mxu0 %v972
      %1141 = vmatpush.xpose.msra.mxu0 %v968
      %1142 = vmatpush.xpose.msra.mxu0 %v964
      %1143 = vmatpush.xpose.msra.mxu0 %v960
      %1144 = vmatpush.xpose.msra.mxu0 %v956
      %1145 = vmatpush.xpose.msra.mxu0 %v952
      %1146 = vmatpush.xpose.msra.mxu0 %v948
      %1147 = vmatpush.xpose.msra.mxu0 %v944
      %1148 = vmatpush.xpose.msra.mxu0 %v940
      %1149 = vmatpush.xpose.msra.mxu0 %v936
      %1150 = vmatpush.xpose.msra.mxu0 %v932
      %1151 = vmatpush.xpose.msra.mxu0 %v928
      %1152 = vmatpush.xpose.msra.mxu0 %v924
      %1153 = vmatpush.xpose.msra.mxu0 %v920
      %1154 = vmatpush.xpose.msra.mxu0 %v916
      %1155 = vmatmul.f32.gmra.mxu0 %v250
      %v1156 = vpop.f32.mrf.mxu0
      %v1157 = vadd.f32 0.0, %v1156
      %1158 = vmatmul.f32.gmra.mxu0 %v253
      %v1159 = vpop.f32.mrf.mxu0
      %v1160 = vadd.f32 0.0, %v1159
      %1161 = vmatmul.f32.gmra.mxu0 %v256
      %v1162 = vpop.f32.mrf.mxu0
      %v1163 = vadd.f32 0.0, %v1162
      %1164 = vmatmul.f32.gmra.mxu0 %v259
      %v1165 = vpop.f32.mrf.mxu0
      %v1166 = vadd.f32 0.0, %v1165
      %1167 = vmatmul.f32.gmra.mxu0 %v262
      %v1168 = vpop.f32.mrf.mxu0
      %v1169 = vadd.f32 0.0, %v1168
      %1170 = vmatmul.f32.gmra.mxu0 %v265
      %v1171 = vpop.f32.mrf.mxu0
      %v1172 = vadd.f32 0.0, %v1171
      %1173 = vmatmul.f32.gmra.mxu0 %v268
      %v1174 = vpop.f32.mrf.mxu0
      %v1175 = vadd.f32 0.0, %v1174
      %1176 = vmatmul.f32.gmra.mxu0 %v271
      %v1177 = vpop.f32.mrf.mxu0
      %v1178 = vadd.f32 0.0, %v1177
      %1179 = vmatmul.f32.gmra.mxu0 %v274
      %v1180 = vpop.f32.mrf.mxu0
      %v1181 = vadd.f32 0.0, %v1180
      %1182 = vmatmul.f32.gmra.mxu0 %v277
      %v1183 = vpop.f32.mrf.mxu0
      %v1184 = vadd.f32 0.0, %v1183
      %1185 = vmatmul.f32.gmra.mxu0 %v280
      %v1186 = vpop.f32.mrf.mxu0
      %v1187 = vadd.f32 0.0, %v1186
      %1188 = vmatmul.f32.gmra.mxu0 %v283
      %v1189 = vpop.f32.mrf.mxu0
      %v1190 = vadd.f32 0.0, %v1189
      %1191 = vmatmul.f32.gmra.mxu0 %v286
      %v1192 = vpop.f32.mrf.mxu0
      %v1193 = vadd.f32 0.0, %v1192
      %1194 = vmatmul.f32.gmra.mxu0 %v289
      %v1195 = vpop.f32.mrf.mxu0
      %v1196 = vadd.f32 0.0, %v1195
      %1197 = vmatmul.f32.gmra.mxu0 %v292
      %v1198 = vpop.f32.mrf.mxu0
      %v1199 = vadd.f32 0.0, %v1198
      %1200 = vmatmul.f32.gmra.mxu0 %v295
      %v1201 = vpop.f32.mrf.mxu0
      %v1202 = vadd.f32 0.0, %v1201
      %1203 = vdwg.mxu0
      %1204 = vmatpush.xpose.msra.mxu0 %v978
      %1205 = vmatpush.xpose.msra.mxu0 %v974
      %1206 = vmatpush.xpose.msra.mxu0 %v970
      %1207 = vmatpush.xpose.msra.mxu0 %v966
      %1208 = vmatpush.xpose.msra.mxu0 %v962
      %1209 = vmatpush.xpose.msra.mxu0 %v958
      %1210 = vmatpush.xpose.msra.mxu0 %v954
      %1211 = vmatpush.xpose.msra.mxu0 %v950
      %1212 = vmatpush.xpose.msra.mxu0 %v946
      %1213 = vmatpush.xpose.msra.mxu0 %v942
      %1214 = vmatpush.xpose.msra.mxu0 %v938
      %1215 = vmatpush.xpose.msra.mxu0 %v934
      %1216 = vmatpush.xpose.msra.mxu0 %v930
      %1217 = vmatpush.xpose.msra.mxu0 %v926
      %1218 = vmatpush.xpose.msra.mxu0 %v922
      %1219 = vmatpush.xpose.msra.mxu0 %v918
      %1220 = vmatmul.f32.gmra.mxu0 %v321
      %v1221 = vpop.f32.mrf.mxu0
      %v1222 = vadd.f32 %v1157, %v1221
      %1223 = vmatmul.f32.gmra.mxu0 %v324
      %v1224 = vpop.f32.mrf.mxu0
      %v1225 = vadd.f32 %v1160, %v1224
      %1226 = vmatmul.f32.gmra.mxu0 %v327
      %v1227 = vpop.f32.mrf.mxu0
      %v1228 = vadd.f32 %v1163, %v1227
      %1229 = vmatmul.f32.gmra.mxu0 %v330
      %v1230 = vpop.f32.mrf.mxu0
      %v1231 = vadd.f32 %v1166, %v1230
      %1232 = vmatmul.f32.gmra.mxu0 %v333
      %v1233 = vpop.f32.mrf.mxu0
      %v1234 = vadd.f32 %v1169, %v1233
      %1235 = vmatmul.f32.gmra.mxu0 %v336
      %v1236 = vpop.f32.mrf.mxu0
      %v1237 = vadd.f32 %v1172, %v1236
      %1238 = vmatmul.f32.gmra.mxu0 %v339
      %v1239 = vpop.f32.mrf.mxu0
      %v1240 = vadd.f32 %v1175, %v1239
      %1241 = vmatmul.f32.gmra.mxu0 %v342
      %v1242 = vpop.f32.mrf.mxu0
      %v1243 = vadd.f32 %v1178, %v1242
      %1244 = vmatmul.f32.gmra.mxu0 %v345
      %v1245 = vpop.f32.mrf.mxu0
      %v1246 = vadd.f32 %v1181, %v1245
      %1247 = vmatmul.f32.gmra.mxu0 %v348
      %v1248 = vpop.f32.mrf.mxu0
      %v1249 = vadd.f32 %v1184, %v1248
      %1250 = vmatmul.f32.gmra.mxu0 %v351
      %v1251 = vpop.f32.mrf.mxu0
      %v1252 = vadd.f32 %v1187, %v1251
      %1253 = vmatmul.f32.gmra.mxu0 %v354
      %v1254 = vpop.f32.mrf.mxu0
      %v1255 = vadd.f32 %v1190, %v1254
      %1256 = vmatmul.f32.gmra.mxu0 %v357
      %v1257 = vpop.f32.mrf.mxu0
      %v1258 = vadd.f32 %v1193, %v1257
      %1259 = vmatmul.f32.gmra.mxu0 %v360
      %v1260 = vpop.f32.mrf.mxu0
      %v1261 = vadd.f32 %v1196, %v1260
      %1262 = vmatmul.f32.gmra.mxu0 %v363
      %v1263 = vpop.f32.mrf.mxu0
      %v1264 = vadd.f32 %v1199, %v1263
      %1265 = vmatmul.f32.gmra.mxu0 %v366
      %v1266 = vpop.f32.mrf.mxu0
      %v1267 = vadd.f32 %v1202, %v1266
      %1268 = vdwg.mxu0
      %1269 = vmatpush.xpose.msra.mxu0 %v1040
      %1270 = vmatpush.xpose.msra.mxu0 %v1036
      %1271 = vmatpush.xpose.msra.mxu0 %v1032
      %1272 = vmatpush.xpose.msra.mxu0 %v1028
      %1273 = vmatpush.xpose.msra.mxu0 %v1024
      %1274 = vmatpush.xpose.msra.mxu0 %v1020
      %1275 = vmatpush.xpose.msra.mxu0 %v1016
      %1276 = vmatpush.xpose.msra.mxu0 %v1012
      %1277 = vmatpush.xpose.msra.mxu0 %v1008
      %1278 = vmatpush.xpose.msra.mxu0 %v1004
      %1279 = vmatpush.xpose.msra.mxu0 %v1000
      %1280 = vmatpush.xpose.msra.mxu0 %v996
      %1281 = vmatpush.xpose.msra.mxu0 %v992
      %1282 = vmatpush.xpose.msra.mxu0 %v988
      %1283 = vmatpush.xpose.msra.mxu0 %v984
      %1284 = vmatpush.xpose.msra.mxu0 %v980
      %1285 = vmatmul.f32.gmra.mxu0 %v250
      %v1286 = vpop.f32.mrf.mxu0
      %v1287 = vadd.f32 0.0, %v1286
      %1288 = vmatmul.f32.gmra.mxu0 %v253
      %v1289 = vpop.f32.mrf.mxu0
      %v1290 = vadd.f32 0.0, %v1289
      %1291 = vmatmul.f32.gmra.mxu0 %v256
      %v1292 = vpop.f32.mrf.mxu0
      %v1293 = vadd.f32 0.0, %v1292
      %1294 = vmatmul.f32.gmra.mxu0 %v259
      %v1295 = vpop.f32.mrf.mxu0
      %v1296 = vadd.f32 0.0, %v1295
      %1297 = vmatmul.f32.gmra.mxu0 %v262
      %v1298 = vpop.f32.mrf.mxu0
      %v1299 = vadd.f32 0.0, %v1298
      %1300 = vmatmul.f32.gmra.mxu0 %v265
      %v1301 = vpop.f32.mrf.mxu0
      %v1302 = vadd.f32 0.0, %v1301
      %1303 = vmatmul.f32.gmra.mxu0 %v268
      %v1304 = vpop.f32.mrf.mxu0
      %v1305 = vadd.f32 0.0, %v1304
      %1306 = vmatmul.f32.gmra.mxu0 %v271
      %v1307 = vpop.f32.mrf.mxu0
      %v1308 = vadd.f32 0.0, %v1307
      %1309 = vmatmul.f32.gmra.mxu0 %v274
      %v1310 = vpop.f32.mrf.mxu0
      %v1311 = vadd.f32 0.0, %v1310
      %1312 = vmatmul.f32.gmra.mxu0 %v277
      %v1313 = vpop.f32.mrf.mxu0
      %v1314 = vadd.f32 0.0, %v1313
      %1315 = vmatmul.f32.gmra.mxu0 %v280
      %v1316 = vpop.f32.mrf.mxu0
      %v1317 = vadd.f32 0.0, %v1316
      %1318 = vmatmul.f32.gmra.mxu0 %v283
      %v1319 = vpop.f32.mrf.mxu0
      %v1320 = vadd.f32 0.0, %v1319
      %1321 = vmatmul.f32.gmra.mxu0 %v286
      %v1322 = vpop.f32.mrf.mxu0
      %v1323 = vadd.f32 0.0, %v1322
      %1324 = vmatmul.f32.gmra.mxu0 %v289
      %v1325 = vpop.f32.mrf.mxu0
      %v1326 = vadd.f32 0.0, %v1325
      %1327 = vmatmul.f32.gmra.mxu0 %v292
      %v1328 = vpop.f32.mrf.mxu0
      %v1329 = vadd.f32 0.0, %v1328
      %1330 = vmatmul.f32.gmra.mxu0 %v295
      %v1331 = vpop.f32.mrf.mxu0
      %v1332 = vadd.f32 0.0, %v1331
      %1333 = vdwg.mxu0
      %1334 = vmatpush.xpose.msra.mxu0 %v1042
      %1335 = vmatpush.xpose.msra.mxu0 %v1038
      %1336 = vmatpush.xpose.msra.mxu0 %v1034
      %1337 = vmatpush.xpose.msra.mxu0 %v1030
      %1338 = vmatpush.xpose.msra.mxu0 %v1026
      %1339 = vmatpush.xpose.msra.mxu0 %v1022
      %1340 = vmatpush.xpose.msra.mxu0 %v1018
      %1341 = vmatpush.xpose.msra.mxu0 %v1014
      %1342 = vmatpush.xpose.msra.mxu0 %v1010
      %1343 = vmatpush.xpose.msra.mxu0 %v1006
      %1344 = vmatpush.xpose.msra.mxu0 %v1002
      %1345 = vmatpush.xpose.msra.mxu0 %v998
      %1346 = vmatpush.xpose.msra.mxu0 %v994
      %1347 = vmatpush.xpose.msra.mxu0 %v990
      %1348 = vmatpush.xpose.msra.mxu0 %v986
      %1349 = vmatpush.xpose.msra.mxu0 %v982
      %1350 = vmatmul.f32.gmra.mxu0 %v321
      %v1351 = vpop.f32.mrf.mxu0
      %v1352 = vadd.f32 %v1287, %v1351
      %1353 = vmatmul.f32.gmra.mxu0 %v324
      %v1354 = vpop.f32.mrf.mxu0
      %v1355 = vadd.f32 %v1290, %v1354
      %1356 = vmatmul.f32.gmra.mxu0 %v327
      %v1357 = vpop.f32.mrf.mxu0
      %v1358 = vadd.f32 %v1293, %v1357
      %1359 = vmatmul.f32.gmra.mxu0 %v330
      %v1360 = vpop.f32.mrf.mxu0
      %v1361 = vadd.f32 %v1296, %v1360
      %1362 = vmatmul.f32.gmra.mxu0 %v333
      %v1363 = vpop.f32.mrf.mxu0
      %v1364 = vadd.f32 %v1299, %v1363
      %1365 = vmatmul.f32.gmra.mxu0 %v336
      %v1366 = vpop.f32.mrf.mxu0
      %v1367 = vadd.f32 %v1302, %v1366
      %1368 = vmatmul.f32.gmra.mxu0 %v339
      %v1369 = vpop.f32.mrf.mxu0
      %v1370 = vadd.f32 %v1305, %v1369
      %1371 = vmatmul.f32.gmra.mxu0 %v342
      %v1372 = vpop.f32.mrf.mxu0
      %v1373 = vadd.f32 %v1308, %v1372
      %1374 = vmatmul.f32.gmra.mxu0 %v345
      %v1375 = vpop.f32.mrf.mxu0
      %v1376 = vadd.f32 %v1311, %v1375
      %1377 = vmatmul.f32.gmra.mxu0 %v348
      %v1378 = vpop.f32.mrf.mxu0
      %v1379 = vadd.f32 %v1314, %v1378
      %1380 = vmatmul.f32.gmra.mxu0 %v351
      %v1381 = vpop.f32.mrf.mxu0
      %v1382 = vadd.f32 %v1317, %v1381
      %1383 = vmatmul.f32.gmra.mxu0 %v354
      %v1384 = vpop.f32.mrf.mxu0
      %v1385 = vadd.f32 %v1320, %v1384
      %1386 = vmatmul.f32.gmra.mxu0 %v357
      %v1387 = vpop.f32.mrf.mxu0
      %v1388 = vadd.f32 %v1323, %v1387
      %1389 = vmatmul.f32.gmra.mxu0 %v360
      %v1390 = vpop.f32.mrf.mxu0
      %v1391 = vadd.f32 %v1326, %v1390
      %1392 = vmatmul.f32.gmra.mxu0 %v363
      %v1393 = vpop.f32.mrf.mxu0
      %v1394 = vadd.f32 %v1329, %v1393
      %1395 = vmatmul.f32.gmra.mxu0 %v366
      %v1396 = vpop.f32.mrf.mxu0
      %v1397 = vadd.f32 %v1332, %v1396
      %1398 = vdwg.mxu0
      %v1399 = vrcp.pop %v1045
      %v1400 = vrcp.pop %v1048
      %v1401 = vrcp.pop %v1051
      %v1402 = vrcp.pop %v1054
      %v1403 = vrcp.pop %v1057
      %v1404 = vrcp.pop %v1060
      %v1405 = vrcp.pop %v1063
      %v1406 = vrcp.pop %v1066
      %v1407 = vrcp.pop %v1069
      %v1408 = vrcp.pop %v1072
      %v1409 = vrcp.pop %v1075
      %v1410 = vrcp.pop %v1078
      %v1411 = vrcp.pop %v1081
      %v1412 = vrcp.pop %v1084
      %v1413 = vrcp.pop %v1087
      %v1414 = vrcp.pop %v1090
      %v1415 = vrcp.pop %v1093
      %v1416 = vrcp.pop %v1096
      %v1417 = vrcp.pop %v1099
      %v1418 = vrcp.pop %v1102
      %v1419 = vrcp.pop %v1105
      %v1420 = vrcp.pop %v1108
      %v1421 = vrcp.pop %v1111
      %v1422 = vrcp.pop %v1114
      %v1423 = vrcp.pop %v1117
      %v1424 = vrcp.pop %v1120
      %v1425 = vrcp.pop %v1123
      %v1426 = vrcp.pop %v1126
      %v1427 = vrcp.pop %v1129
      %v1428 = vrcp.pop %v1132
      %v1429 = vrcp.pop %v1135
      %v1430 = vrcp.pop %v1138
      %v1431 = vmul.f32 %v1045, %v1399
      %v1432 = vmul.f32 %v1048, %v1400
      %v1433 = vmul.f32 %v1051, %v1401
      %v1434 = vmul.f32 %v1054, %v1402
      %v1435 = vmul.f32 %v1057, %v1403
      %v1436 = vmul.f32 %v1060, %v1404
      %v1437 = vmul.f32 %v1063, %v1405
      %v1438 = vmul.f32 %v1066, %v1406
      %v1439 = vmul.f32 %v1069, %v1407
      %v1440 = vmul.f32 %v1072, %v1408
      %v1441 = vmul.f32 %v1075, %v1409
      %v1442 = vmul.f32 %v1078, %v1410
      %v1443 = vmul.f32 %v1081, %v1411
      %v1444 = vmul.f32 %v1084, %v1412
      %v1445 = vmul.f32 %v1087, %v1413
      %v1446 = vmul.f32 %v1090, %v1414
      %v1447 = vmul.f32 %v1093, %v1415
      %v1448 = vmul.f32 %v1096, %v1416
      %v1449 = vmul.f32 %v1099, %v1417
      %v1450 = vmul.f32 %v1102, %v1418
      %v1451 = vmul.f32 %v1105, %v1419
      %v1452 = vmul.f32 %v1108, %v1420
      %v1453 = vmul.f32 %v1111, %v1421
      %v1454 = vmul.f32 %v1114, %v1422
      %v1455 = vmul.f32 %v1117, %v1423
      %v1456 = vmul.f32 %v1120, %v1424
      %v1457 = vmul.f32 %v1123, %v1425
      %v1458 = vmul.f32 %v1126, %v1426
      %v1459 = vmul.f32 %v1129, %v1427
      %v1460 = vmul.f32 %v1132, %v1428
      %v1461 = vmul.f32 %v1135, %v1429
      %v1462 = vmul.f32 %v1138, %v1430
      %v1463 = vsub.f32 2.0, %v1431
      %v1464 = vsub.f32 2.0, %v1432
      %v1465 = vsub.f32 2.0, %v1433
      %v1466 = vsub.f32 2.0, %v1434
      %v1467 = vsub.f32 2.0, %v1435
      %v1468 = vsub.f32 2.0, %v1436
      %v1469 = vsub.f32 2.0, %v1437
      %v1470 = vsub.f32 2.0, %v1438
      %v1471 = vsub.f32 2.0, %v1439
      %v1472 = vsub.f32 2.0, %v1440
      %v1473 = vsub.f32 2.0, %v1441
      %v1474 = vsub.f32 2.0, %v1442
      %v1475 = vsub.f32 2.0, %v1443
      %v1476 = vsub.f32 2.0, %v1444
      %v1477 = vsub.f32 2.0, %v1445
      %v1478 = vsub.f32 2.0, %v1446
      %v1479 = vsub.f32 2.0, %v1447
      %v1480 = vsub.f32 2.0, %v1448
      %v1481 = vsub.f32 2.0, %v1449
      %v1482 = vsub.f32 2.0, %v1450
      %v1483 = vsub.f32 2.0, %v1451
      %v1484 = vsub.f32 2.0, %v1452
      %v1485 = vsub.f32 2.0, %v1453
      %v1486 = vsub.f32 2.0, %v1454
      %v1487 = vsub.f32 2.0, %v1455
      %v1488 = vsub.f32 2.0, %v1456
      %v1489 = vsub.f32 2.0, %v1457
      %v1490 = vsub.f32 2.0, %v1458
      %v1491 = vsub.f32 2.0, %v1459
      %v1492 = vsub.f32 2.0, %v1460
      %v1493 = vsub.f32 2.0, %v1461
      %v1494 = vsub.f32 2.0, %v1462
      %v1495 = vmul.f32 %v1399, %v1463
      %v1496 = vmul.f32 %v1400, %v1464
      %v1497 = vmul.f32 %v1401, %v1465
      %v1498 = vmul.f32 %v1402, %v1466
      %v1499 = vmul.f32 %v1403, %v1467
      %v1500 = vmul.f32 %v1404, %v1468
      %v1501 = vmul.f32 %v1405, %v1469
      %v1502 = vmul.f32 %v1406, %v1470
      %v1503 = vmul.f32 %v1407, %v1471
      %v1504 = vmul.f32 %v1408, %v1472
      %v1505 = vmul.f32 %v1409, %v1473
      %v1506 = vmul.f32 %v1410, %v1474
      %v1507 = vmul.f32 %v1411, %v1475
      %v1508 = vmul.f32 %v1412, %v1476
      %v1509 = vmul.f32 %v1413, %v1477
      %v1510 = vmul.f32 %v1414, %v1478
      %v1511 = vmul.f32 %v1415, %v1479
      %v1512 = vmul.f32 %v1416, %v1480
      %v1513 = vmul.f32 %v1417, %v1481
      %v1514 = vmul.f32 %v1418, %v1482
      %v1515 = vmul.f32 %v1419, %v1483
      %v1516 = vmul.f32 %v1420, %v1484
      %v1517 = vmul.f32 %v1421, %v1485
      %v1518 = vmul.f32 %v1422, %v1486
      %v1519 = vmul.f32 %v1423, %v1487
      %v1520 = vmul.f32 %v1424, %v1488
      %v1521 = vmul.f32 %v1425, %v1489
      %v1522 = vmul.f32 %v1426, %v1490
      %v1523 = vmul.f32 %v1427, %v1491
      %v1524 = vmul.f32 %v1428, %v1492
      %v1525 = vmul.f32 %v1429, %v1493
      %v1526 = vmul.f32 %v1430, %v1494
      %v1559 = vlaneseq
      %v1560 = vand.u32 %v1559, 127
      %v1561 = vperm.slane %v1495, %v1560
      %v1562 = vadd.s32 %v1560, 4294967288
      %v1563 = vperm.slane %v1496, %v1562
      %vm1564 = vcmask 130112
      %v1565 = vsel %vm1564, %v1563, %v1561
      %v1566 = vadd.s32 %v1560, 4294967280
      %v1567 = vperm.slane %v1497, %v1566
      %vm1568 = vcmask 195712
      %v1569 = vsel %vm1568, %v1567, %v1565
      %v1570 = vadd.s32 %v1560, 4294967272
      %v1571 = vperm.slane %v1498, %v1570
      %vm1572 = vcmask 261312
      %v1573 = vsel %vm1572, %v1571, %v1569
      %v1574 = vadd.s32 %v1560, 4294967264
      %v1575 = vperm.slane %v1499, %v1574
      %vm1576 = vcmask 326912
      %v1577 = vsel %vm1576, %v1575, %v1573
      %v1578 = vadd.s32 %v1560, 4294967256
      %v1579 = vperm.slane %v1500, %v1578
      %vm1580 = vcmask 392512
      %v1581 = vsel %vm1580, %v1579, %v1577
      %v1582 = vadd.s32 %v1560, 4294967248
      %v1583 = vperm.slane %v1501, %v1582
      %vm1584 = vcmask 458112
      %v1585 = vsel %vm1584, %v1583, %v1581
      %v1586 = vadd.s32 %v1560, 4294967240
      %v1587 = vperm.slane %v1502, %v1586
      %vm1588 = vcmask 523712
      %v1589 = vsel %vm1588, %v1587, %v1585
      %v1590 = vadd.s32 %v1560, 4294967232
      %v1591 = vperm.slane %v1503, %v1590
      %vm1592 = vcmask 589312
      %v1593 = vsel %vm1592, %v1591, %v1589
      %v1594 = vadd.s32 %v1560, 4294967224
      %v1595 = vperm.slane %v1504, %v1594
      %vm1596 = vcmask 654912
      %v1597 = vsel %vm1596, %v1595, %v1593
      %v1598 = vadd.s32 %v1560, 4294967216
      %v1599 = vperm.slane %v1505, %v1598
      %vm1600 = vcmask 720512
      %v1601 = vsel %vm1600, %v1599, %v1597
      %v1602 = vadd.s32 %v1560, 4294967208
      %v1603 = vperm.slane %v1506, %v1602
      %vm1604 = vcmask 786112
      %v1605 = vsel %vm1604, %v1603, %v1601
      %v1606 = vadd.s32 %v1560, 4294967200
      %v1607 = vperm.slane %v1507, %v1606
      %vm1608 = vcmask 851712
      %v1609 = vsel %vm1608, %v1607, %v1605
      %v1610 = vadd.s32 %v1560, 4294967192
      %v1611 = vperm.slane %v1508, %v1610
      %vm1612 = vcmask 917312
      %v1613 = vsel %vm1612, %v1611, %v1609
      %v1614 = vadd.s32 %v1560, 4294967184
      %v1615 = vperm.slane %v1509, %v1614
      %vm1616 = vcmask 982912
      %v1617 = vsel %vm1616, %v1615, %v1613
      %v1618 = vadd.s32 %v1560, 4294967176
      %v1619 = vperm.slane %v1510, %v1618
      %vm1620 = vcmask 1048512
      %v1621 = vsel %vm1620, %v1619, %v1617
      %v1622 = vperm.slane %v1511, %v1560
      %v1623 = vperm.slane %v1512, %v1562
      %v1624 = vsel %vm1564, %v1623, %v1622
      %v1625 = vperm.slane %v1513, %v1566
      %v1626 = vsel %vm1568, %v1625, %v1624
      %v1627 = vperm.slane %v1514, %v1570
      %v1628 = vsel %vm1572, %v1627, %v1626
      %v1629 = vperm.slane %v1515, %v1574
      %v1630 = vsel %vm1576, %v1629, %v1628
      %v1631 = vperm.slane %v1516, %v1578
      %v1632 = vsel %vm1580, %v1631, %v1630
      %v1633 = vperm.slane %v1517, %v1582
      %v1634 = vsel %vm1584, %v1633, %v1632
      %v1635 = vperm.slane %v1518, %v1586
      %v1636 = vsel %vm1588, %v1635, %v1634
      %v1637 = vperm.slane %v1519, %v1590
      %v1638 = vsel %vm1592, %v1637, %v1636
      %v1639 = vperm.slane %v1520, %v1594
      %v1640 = vsel %vm1596, %v1639, %v1638
      %v1641 = vperm.slane %v1521, %v1598
      %v1642 = vsel %vm1600, %v1641, %v1640
      %v1643 = vperm.slane %v1522, %v1602
      %v1644 = vsel %vm1604, %v1643, %v1642
      %v1645 = vperm.slane %v1523, %v1606
      %v1646 = vsel %vm1608, %v1645, %v1644
      %v1647 = vperm.slane %v1524, %v1610
      %v1648 = vsel %vm1612, %v1647, %v1646
      %v1649 = vperm.slane %v1525, %v1614
      %v1650 = vsel %vm1616, %v1649, %v1648
      %v1651 = vperm.slane %v1526, %v1618
      %v1652 = vsel %vm1620, %v1651, %v1650
      %vm1653 = vcmask 1042434
      %v1654 = vsel %vm1653, %v1621, %v1621
      %vm1655 = vcmask 1043459
      %v1656 = vsel %vm1655, %v1621, %v1654
      %vm1657 = vcmask 1044484
      %v1658 = vsel %vm1657, %v1621, %v1656
      %vm1659 = vcmask 1045509
      %v1660 = vsel %vm1659, %v1621, %v1658
      %vm1661 = vcmask 1046534
      %v1662 = vsel %vm1661, %v1621, %v1660
      %vm1663 = vcmask 1047559
      %v1664 = vsel %vm1663, %v1621, %v1662
      %v1665 = vsel %vm1653, %v1652, %v1652
      %v1666 = vsel %vm1655, %v1652, %v1665
      %v1667 = vsel %vm1657, %v1652, %v1666
      %v1668 = vsel %vm1659, %v1652, %v1667
      %v1669 = vsel %vm1661, %v1652, %v1668
      %v1670 = vsel %vm1663, %v1652, %v1669
      %v1673 = vmul.f32 %v1222, %v1664
      %v1674 = vmul.f32 %v1352, %v1670
      %v1675 = vmul.f32 %v1225, %v1664
      %v1676 = vmul.f32 %v1355, %v1670
      %v1677 = vmul.f32 %v1228, %v1664
      %v1678 = vmul.f32 %v1358, %v1670
      %v1679 = vmul.f32 %v1231, %v1664
      %v1680 = vmul.f32 %v1361, %v1670
      %v1681 = vmul.f32 %v1234, %v1664
      %v1682 = vmul.f32 %v1364, %v1670
      %v1683 = vmul.f32 %v1237, %v1664
      %v1684 = vmul.f32 %v1367, %v1670
      %v1685 = vmul.f32 %v1240, %v1664
      %v1686 = vmul.f32 %v1370, %v1670
      %v1687 = vmul.f32 %v1243, %v1664
      %v1688 = vmul.f32 %v1373, %v1670
      %v1689 = vmul.f32 %v1246, %v1664
      %v1690 = vmul.f32 %v1376, %v1670
      %v1691 = vmul.f32 %v1249, %v1664
      %v1692 = vmul.f32 %v1379, %v1670
      %v1693 = vmul.f32 %v1252, %v1664
      %v1694 = vmul.f32 %v1382, %v1670
      %v1695 = vmul.f32 %v1255, %v1664
      %v1696 = vmul.f32 %v1385, %v1670
      %v1697 = vmul.f32 %v1258, %v1664
      %v1698 = vmul.f32 %v1388, %v1670
      %v1699 = vmul.f32 %v1261, %v1664
      %v1700 = vmul.f32 %v1391, %v1670
      %v1701 = vmul.f32 %v1264, %v1664
      %v1702 = vmul.f32 %v1394, %v1670
      %v1703 = vmul.f32 %v1267, %v1664
      %v1704 = vmul.f32 %v1397, %v1670
      %1705 = vst [vmem:[%s143] sm:$0xff] %v1673
      %1706 = vst [vmem:[%s143 + $0x8] sm:$0xff] %v1674
      %1707 = vst [vmem:[%s143 + $0x10] sm:$0xff] %v1675
      %1708 = vst [vmem:[%s143 + $0x18] sm:$0xff] %v1676
      %1709 = vst [vmem:[%s143 + $0x20] sm:$0xff] %v1677
      %1710 = vst [vmem:[%s143 + $0x28] sm:$0xff] %v1678
      %1711 = vst [vmem:[%s143 + $0x30] sm:$0xff] %v1679
      %1712 = vst [vmem:[%s143 + $0x38] sm:$0xff] %v1680
      %1713 = vst [vmem:[%s143 + $0x40] sm:$0xff] %v1681
      %1714 = vst [vmem:[%s143 + $0x48] sm:$0xff] %v1682
      %1715 = vst [vmem:[%s143 + $0x50] sm:$0xff] %v1683
      %1716 = vst [vmem:[%s143 + $0x58] sm:$0xff] %v1684
      %1717 = vst [vmem:[%s143 + $0x60] sm:$0xff] %v1685
      %1718 = vst [vmem:[%s143 + $0x68] sm:$0xff] %v1686
      %1719 = vst [vmem:[%s143 + $0x70] sm:$0xff] %v1687
      %1720 = vst [vmem:[%s143 + $0x78] sm:$0xff] %v1688
      %1721 = vst [vmem:[%s143 + $0x80] sm:$0xff] %v1689
      %1722 = vst [vmem:[%s143 + $0x88] sm:$0xff] %v1690
      %1723 = vst [vmem:[%s143 + $0x90] sm:$0xff] %v1691
      %1724 = vst [vmem:[%s143 + $0x98] sm:$0xff] %v1692
      %1725 = vst [vmem:[%s143 + $0xa0] sm:$0xff] %v1693
      %1726 = vst [vmem:[%s143 + $0xa8] sm:$0xff] %v1694
      %1727 = vst [vmem:[%s143 + $0xb0] sm:$0xff] %v1695
      %1728 = vst [vmem:[%s143 + $0xb8] sm:$0xff] %v1696
      %1729 = vst [vmem:[%s143 + $0xc0] sm:$0xff] %v1697
      %1730 = vst [vmem:[%s143 + $0xc8] sm:$0xff] %v1698
      %1731 = vst [vmem:[%s143 + $0xd0] sm:$0xff] %v1699
      %1732 = vst [vmem:[%s143 + $0xd8] sm:$0xff] %v1700
      %1733 = vst [vmem:[%s143 + $0xe0] sm:$0xff] %v1701
      %1734 = vst [vmem:[%s143 + $0xe8] sm:$0xff] %v1702
      %1735 = vst [vmem:[%s143 + $0xf0] sm:$0xff] %v1703
      %1736 = vst [vmem:[%s143 + $0xf8] sm:$0xff] %v1704
      %p1737 = scmp.lt.s32.totalorder %s13, 1
      %s1738 = scalar_select %p1737, %s13, 1
      %s1739 = smul.addr %s1738, 32
      %s1740 = smul.addr %s1739, 8
      %s1741 = scalar_lea.vmem %s2, %s1740
      // Predicated region
      $region29: #{attention_module_pallas.1} parent=27 // pred_check
        %p1742 = pneg %p78
      $region30: #{attention_module_pallas.1} parent=27 // pred_check_branch
        %1744 = sbr.rel (%p1742) target = $region32
      $region31: #{attention_module_pallas.1} parent=27 // pred_region
        _
      $region32: #{attention_module_pallas.1} parent=27 // pred_fallthru
        _
    $region28: #{attention_module_pallas.1} parent=5 // pred_fallthru
      _
    %p1745 = scmp.le.s32.totalorder 2, %s8
    // Predicated region
    $region33: #{attention_module_pallas.1} parent=5 // pred_check
      %p1746 = pneg %p1745
    $region34: #{attention_module_pallas.1} parent=5 // pred_check_branch
      %1748 = sbr.rel (%p1746) target = $region36
    $region35: #{attention_module_pallas.1} parent=5 // pred_region
      %s1749 = ssub.s32 %s8, 2
      // Predicated region
      $region37: #{attention_module_pallas.1} parent=35 // pred_check
        %p1750 = pneg %p84
      $region38: #{attention_module_pallas.1} parent=35 // pred_check_branch
        %1752 = sbr.rel (%p1750) target = $region40
      $region39: #{attention_module_pallas.1} parent=35 // pred_region
        %p1753 = scmp.lt.s32.totalorder %s14, 1
        %s1754 = scalar_select %p1753, %s14, 1
        %s1755 = smul.addr %s1754, 32
        %s1756 = smul.addr %s1755, 8
        %s1757 = scalar_lea.vmem %s2, %s1756
      $region40: #{attention_module_pallas.1} parent=35 // pred_fallthru
        _
    $region36: #{attention_module_pallas.1} parent=5 // pred_fallthru
      _
  $region6: #{attention_module_pallas.1} parent=0 // loop_footer
    %s12 = sadd.s32 1, %s8
  $region7: #{attention_module_pallas.1} parent=0 // loop_footer_branch
    %7 = sbr.rel target = $region3
  $region8: #{attention_module_pallas.1} parent=0 // loop_exit
    _

</llo_original>
